<compile_context>
chip_gen: v7x
topology: tpu7x:2x2x1
jax: 0.10.0
libtpu: 0.0.40
codegen_flags: <defaults>
</compile_context>

<pallas_src>
import jax
import jax.numpy as jnp
from jax.experimental import pallas as pl
from jax.experimental.pallas import tpu as pltpu


# ---------------------------------------------------------------------------
# Kernel
# ---------------------------------------------------------------------------
def multinet_kernel(x_ref,            # (tb, C*T)     f32 (or bf16)
                    w1_ref, b1_ref,   # (C, T,  256) bf16, (C, 1, 256) f32
                    w2_ref, b2_ref,   # (C, 256,128) bf16, (C, 1, 128) f32
                    w3_ref, b3_ref,   # (C, 128, 64) bf16, (C, 1,  64) f32
                    w34_ref,          # (C, 64, H)   bf16   fused Linear(64,1) x head column
                    bf_ref,           # (1, H)       f32    head bias + sum_c b4[c]*Wf[:,c]
                    wf2_ref, bf2_ref, # (H, NCP)     bf16, (1, NCP) f32
                    out_ref):         # (tb, NCP)    f32
    C, T, _ = w1_ref.shape
    tb = x_ref.shape[0]
    H = w34_ref.shape[2]

    # Head accumulator lives as a plain value (no cross-grid-step state).
    y = jnp.zeros((tb, H), jnp.float32)

    # Channels are few: statically unrolled loop; weight indices are static
    # leading-axis slices of VMEM-resident blocks.
    for c in range(C):
        # Static, lane-tile-aligned slice (T % 128 == 0) of the [tb, C*T] tile.
        xc = x_ref[:, c * T:(c + 1) * T].astype(jnp.bfloat16)
        h = jnp.dot(xc, w1_ref[c], preferred_element_type=jnp.float32)        # (tb, 256)
        h = jnp.maximum(h + b1_ref[c], 0.0)
        h = jnp.dot(h.astype(jnp.bfloat16), w2_ref[c],
                    preferred_element_type=jnp.float32)                       # (tb, 128)
        h = jnp.maximum(h + b2_ref[c], 0.0)
        h = jnp.dot(h.astype(jnp.bfloat16), w3_ref[c],
                    preferred_element_type=jnp.float32)                       # (tb, 64)
        h = jnp.maximum(h + b3_ref[c], 0.0)
        # Linear(64,1) folded into the head column:
        #   (h . w4_c + b4_c) * Wf[:,c]  ==  h @ (w4_c (x) Wf[:,c])  + b4_c*Wf[:,c]
        # (the b4 term is pre-folded into bf_ref).
        y = y + jnp.dot(h.astype(jnp.bfloat16), w34_ref[c],
                        preferred_element_type=jnp.float32)                   # (tb, H)

    y = jnp.maximum(y + bf_ref[...], 0.0)                                     # (tb, H)
    out_ref[...] = jnp.dot(y.astype(jnp.bfloat16), wf2_ref[...],
                           preferred_element_type=jnp.float32) + bf2_ref[...]


# ---------------------------------------------------------------------------
# Tiling / VMEM heuristics
# ---------------------------------------------------------------------------
def _pick_batch_tile(B, per_row_bytes, tile_budget_bytes=24 << 20, cap=512):
    """Largest multiple-of-8 divisor of B within the cap / VMEM budget,
    preferring >= 2 tiles so the 'parallel' batch axis shards across the two
    TensorCores of a v7x chip (single-TC v5e/v6e just see a 2-step loop)."""
    cap = min(cap, max(8, tile_budget_bytes // max(per_row_bytes, 1)))
    cap = max(8, (cap // 8) * 8)
    tb = B
    for cand in range(min(cap, B), 7, -1):
        if B % cand == 0 and cand % 8 == 0:
            tb = cand
            break
    if tb == B and B >= 16 and B % 16 == 0:
        tb = B // 2                      # guarantee >= 2 tiles for v7x megacore
    return tb


def _vmem_limit_bytes(tb, C, T, H1, H2, H3, H, NCP, x_itemsize):
    """Explicit scoped-VMEM request with headroom, clamped well inside v7x's
    64 MiB physical VMEM (v5e's scoped default is only 16 MiB, so be explicit)."""
    weight_bytes = 2 * (C * (T * H1 + H1 * H2 + H2 * H3 + H3 * H) + H * NCP)   # bf16
    bias_bytes = 4 * 8 * (C * (H1 + H2 + H3) + H + NCP)                        # 8-sublane padding
    x_bytes = tb * C * T * x_itemsize
    out_bytes = tb * NCP * 4
    live_bytes = tb * (H1 + H2 + H3 + 2 * H + NCP) * 4
    est = 2 * (weight_bytes + bias_bytes + x_bytes + out_bytes) + live_bytes   # double-buffered
    return int(min(max(2 * est, 32 << 20), 48 << 20))


# ---------------------------------------------------------------------------
# Wrapper
# ---------------------------------------------------------------------------
def multinet_forward(x, params, num_classes):
    """x: [B, C, T] (f32 or bf16) -> [B, num_classes] f32."""
    p = params
    B, C, T = x.shape
    H1 = p["w1"].shape[2]
    H2 = p["w2"].shape[2]
    H3 = p["w3"].shape[2]
    H = p["w34"].shape[2]
    NCP = p["wf2"].shape[1]
    assert T % 128 == 0, "num_timesteps must be a multiple of 128 (lane dim)"
    # TODO(synk): zero-pad T up to a multiple of 128 for arbitrary num_timesteps.

    x_itemsize = jnp.dtype(x.dtype).itemsize
    per_row_bytes = 2 * C * T * x_itemsize + (H1 + H2 + H3 + 2 * H + NCP) * 4 + 2 * NCP * 4
    tb = _pick_batch_tile(B, per_row_bytes)
    vmem_limit = _vmem_limit_bytes(tb, C, T, H1, H2, H3, H, NCP, x_itemsize)

    # Free, contiguous collapse of the trailing dims (no HBM transpose pass).
    x2 = x.reshape(B, C * T)

    in_specs = [
        pl.BlockSpec((tb, C * T), lambda bb: (bb, 0)),        # x (only streamed input)
        pl.BlockSpec((C, T, H1),  lambda bb: (0, 0, 0)),      # w1  (VMEM-resident)
        pl.BlockSpec((C, 1, H1),  lambda bb: (0, 0, 0)),      # b1
        pl.BlockSpec((C, H1, H2), lambda bb: (0, 0, 0)),      # w2
        pl.BlockSpec((C, 1, H2),  lambda bb: (0, 0, 0)),      # b2
        pl.BlockSpec((C, H2, H3), lambda bb: (0, 0, 0)),      # w3
        pl.BlockSpec((C, 1, H3),  lambda bb: (0, 0, 0)),      # b3
        pl.BlockSpec((C, H3, H),  lambda bb: (0, 0, 0)),      # w34 = w4 (x) Wf-column
        pl.BlockSpec((1, H),      lambda bb: (0, 0)),         # bf (with b4 folded in)
        pl.BlockSpec((H, NCP),    lambda bb: (0, 0)),         # wf2
        pl.BlockSpec((1, NCP),    lambda bb: (0, 0)),         # bf2
    ]

    out = pl.pallas_call(
        multinet_kernel,
        out_shape=jax.ShapeDtypeStruct((B, NCP), jnp.float32),
        grid_spec=pltpu.PrefetchScalarGridSpec(
            num_scalar_prefetch=0,
            grid=(B // tb,),
            in_specs=in_specs,
            out_specs=pl.BlockSpec((tb, NCP), lambda bb: (bb, 0))),
        compiler_params=pltpu.CompilerParams(
            dimension_semantics=("parallel",),
            vmem_limit_bytes=vmem_limit),
    )(x2, p["w1"], p["b1"], p["w2"], p["b2"], p["w3"], p["b3"],
      p["w34"], p["bf"], p["wf2"], p["bf2"])
    return out[:, :num_classes]


# ---------------------------------------------------------------------------
# Parameters (PyTorch-style uniform(+-1/sqrt(fan_in)) init)
# ---------------------------------------------------------------------------
def init_params(key, num_channels, num_timesteps, num_classes,
                weight_dtype=jnp.bfloat16):
    """Per-channel Linear weights stored transposed ([in, out]) and stacked
    along a leading channel axis (matmul weights bf16, biases f32).
    The Linear(64,1) of channel c and column c of the head Linear(C,128) are
    pre-fused into W34[c] = outer(w4[c], Wf[:,c]); sum_c b4[c]*Wf[:,c] is
    folded into the head bias.  Linear(128,NC) is stored [128, NCP] with the
    class axis zero-padded to a lane-dense multiple of 128."""
    C, T, NC = num_channels, num_timesteps, num_classes
    H1, H2, H3, H = 256, 128, 64, 128

    def linear(k, fan_in, fan_out):
        bound = 1.0 / float(fan_in) ** 0.5
        kw, kb = jax.random.split(k)
        w = jax.random.uniform(kw, (fan_in, fan_out), jnp.float32, -bound, bound)
        b = jax.random.uniform(kb, (fan_out,), jnp.float32, -bound, bound)
        return w, b

    keys = jax.random.split(key, 4 * C + 2)
    w1l, b1l, w2l, b2l, w3l, b3l, w4l, b4l = ([] for _ in range(8))
    for c in range(C):
        k0, k1, k2, k3 = keys[4 * c: 4 * c + 4]
        w, b = linear(k0, T, H1);  w1l.append(w); b1l.append(b)
        w, b = linear(k1, H1, H2); w2l.append(w); b2l.append(b)
        w, b = linear(k2, H2, H3); w3l.append(w); b3l.append(b)
        w, b = linear(k3, H3, 1);  w4l.append(w[:, 0]); b4l.append(b[0])

    w1 = jnp.stack(w1l).astype(weight_dtype)                  # [C, T, 256]
    b1 = jnp.stack(b1l).reshape(C, 1, H1)
    w2 = jnp.stack(w2l).astype(weight_dtype)                  # [C, 256, 128]
    b2 = jnp.stack(b2l).reshape(C, 1, H2)
    w3 = jnp.stack(w3l).astype(weight_dtype)                  # [C, 128, 64]
    b3 = jnp.stack(b3l).reshape(C, 1, H3)
    w4 = jnp.stack(w4l)                                       # [C, 64]  f32
    b4 = jnp.stack(b4l)                                       # [C]      f32

    wf_t, bf = linear(keys[-2], C, H)                         # wf_t[c,:] == W_f[:,c]
    w34 = jnp.einsum("ci,cj->cij", w4, wf_t).astype(weight_dtype)   # [C, 64, H]
    bf_adj = (bf + jnp.sum(b4[:, None] * wf_t, axis=0)).reshape(1, H)

    wf2_t, bf2 = linear(keys[-1], H, NC)                      # [128, NC]
    ncp = ((NC + 127) // 128) * 128                           # lane-dense padding
    wf2 = jnp.zeros((H, ncp), jnp.float32).at[:, :NC].set(wf2_t).astype(weight_dtype)
    bf2 = jnp.zeros((1, ncp), jnp.float32).at[0, :NC].set(bf2)

    return dict(w1=w1, b1=b1, w2=w2, b2=b2, w3=w3, b3=b3,
                w34=w34, bf=bf_adj, wf2=wf2, bf2=bf2)


# ---------------------------------------------------------------------------
# Pure-JAX reference (same stored weights, same bf16-in / f32-accumulate
# precision as the kernel; structurally mirrors the PyTorch forward).
# ---------------------------------------------------------------------------
def reference_forward(x, params, num_classes):
    p = params
    B, C, T = x.shape

    def bdot(a, w):
        return jnp.dot(a.astype(jnp.bfloat16), w.astype(jnp.bfloat16),
                       preferred_element_type=jnp.float32)

    y = jnp.zeros((B, p["bf"].shape[1]), jnp.float32)
    for c in range(C):
        h = jnp.maximum(bdot(x[:, c, :], p["w1"][c]) + p["b1"][c], 0.0)
        h = jnp.maximum(bdot(h, p["w2"][c]) + p["b2"][c], 0.0)
        h = jnp.maximum(bdot(h, p["w3"][c]) + p["b3"][c], 0.0)
        y = y + bdot(h, p["w34"][c])          # fused Linear(64,1) + head column
    y = jnp.maximum(y + p["bf"], 0.0)
    out = bdot(y, p["wf2"]) + p["bf2"]
    return out[:, :num_classes]


if __name__ == "__main__":
    # Small demo shapes: batch=64 (-> two batch tiles of 32, exercising the
    # parallel grid axis), 4 channels, 128 timesteps, 3 classes.
    B, C, T, NC = 64, 4, 128, 3

    key = jax.random.PRNGKey(0)
    kx, kp = jax.random.split(key)
    x = jax.random.normal(kx, (B, C, T), jnp.float32)
    params = init_params(kp, C, T, NC)

    fwd = jax.jit(multinet_forward, static_argnums=(2,))
    out = jax.block_until_ready(fwd(x, params, NC))
    ref = jax.block_until_ready(reference_forward(x, params, NC))

    assert out.shape == (B, NC), out.shape
    max_err = float(jnp.max(jnp.abs(out - ref)))
    assert jnp.allclose(out, ref, atol=2e-3, rtol=2e-3), max_err
    print("KERNEL_OK")
</pallas_src>

<mosaic_0001>
module attributes {stable_mosaic.version = 11 : i64} {
  func.func @multinet_kernel(%arg0: i32, %arg1: memref<32x512xf32, #tpu.memory_space<vmem>>, %arg2: memref<4x128x256xbf16, #tpu.memory_space<vmem>>, %arg3: memref<4x1x256xf32, #tpu.memory_space<vmem>>, %arg4: memref<4x256x128xbf16, #tpu.memory_space<vmem>>, %arg5: memref<4x1x128xf32, #tpu.memory_space<vmem>>, %arg6: memref<4x128x64xbf16, #tpu.memory_space<vmem>>, %arg7: memref<4x1x64xf32, #tpu.memory_space<vmem>>, %arg8: memref<4x64x128xbf16, #tpu.memory_space<vmem>>, %arg9: memref<1x128xf32, #tpu.memory_space<vmem>>, %arg10: memref<128x128xbf16, #tpu.memory_space<vmem>>, %arg11: memref<1x128xf32, #tpu.memory_space<vmem>>, %arg12: memref<32x128xf32, #tpu.memory_space<vmem>>) attributes {dimension_semantics = [#tpu.dimension_semantics<parallel>], iteration_bounds = array<i64: 2>, scalar_prefetch = 0 : i64, scratch_operands = 0 : i64, tpu.core_type = #tpu.core_type<tc>, window_params = [{transform_indices = @transform_0, window_bounds = array<i64: 32, 512>}, {pipeline_mode = #tpu.pipeline_mode<synchronous>, transform_indices = @transform_1, window_bounds = array<i64: 4, 128, 256>}, {pipeline_mode = #tpu.pipeline_mode<synchronous>, transform_indices = @transform_2, window_bounds = array<i64: 4, 1, 256>}, {pipeline_mode = #tpu.pipeline_mode<synchronous>, transform_indices = @transform_3, window_bounds = array<i64: 4, 256, 128>}, {pipeline_mode = #tpu.pipeline_mode<synchronous>, transform_indices = @transform_4, window_bounds = array<i64: 4, 1, 128>}, {pipeline_mode = #tpu.pipeline_mode<synchronous>, transform_indices = @transform_5, window_bounds = array<i64: 4, 128, 64>}, {pipeline_mode = #tpu.pipeline_mode<synchronous>, transform_indices = @transform_6, window_bounds = array<i64: 4, 1, 64>}, {pipeline_mode = #tpu.pipeline_mode<synchronous>, transform_indices = @transform_7, window_bounds = array<i64: 4, 64, 128>}, {pipeline_mode = #tpu.pipeline_mode<synchronous>, transform_indices = @transform_8, window_bounds = array<i64: 1, 128>}, {pipeline_mode = #tpu.pipeline_mode<synchronous>, transform_indices = @transform_9, window_bounds = array<i64: 128, 128>}, {pipeline_mode = #tpu.pipeline_mode<synchronous>, transform_indices = @transform_10, window_bounds = array<i64: 1, 128>}, {transform_indices = @transform_11, window_bounds = array<i64: 32, 128>}]} {
    %cst = arith.constant 0.000000e+00 : f32
    %0 = vector.broadcast %cst : f32 to vector<32x128xf32>
    %c0 = arith.constant 0 : index
    %c0_0 = arith.constant 0 : index
    %1 = vector.load %arg1[%c0, %c0_0] : memref<32x512xf32, #tpu.memory_space<vmem>>, vector<32x128xf32>
    %2 = arith.truncf %1 : vector<32x128xf32> to vector<32x128xbf16>
    %c0_1 = arith.constant 0 : index
    %c0_2 = arith.constant 0 : index
    %c0_3 = arith.constant 0 : index
    %3 = vector.load %arg2[%c0_1, %c0_2, %c0_3] : memref<4x128x256xbf16, #tpu.memory_space<vmem>>, vector<1x128x256xbf16>
    %4 = vector.shape_cast %3 : vector<1x128x256xbf16> to vector<128x256xbf16>
    %cst_4 = arith.constant dense<0.000000e+00> : vector<32x256xf32>
    %5 = tpu.matmul %2, %4, %cst_4 {dimension_numbers = #tpu.dot_dimension_numbers<[1], [0], [0], [1], [0, 0, 1, 1], [], []>} : vector<32x128xbf16>, vector<128x256xbf16>, vector<32x256xf32> -> vector<32x256xf32>
    %c0_5 = arith.constant 0 : index
    %c0_6 = arith.constant 0 : index
    %c0_7 = arith.constant 0 : index
    %6 = vector.load %arg3[%c0_5, %c0_6, %c0_7] : memref<4x1x256xf32, #tpu.memory_space<vmem>>, vector<1x1x256xf32>
    %7 = vector.shape_cast %6 : vector<1x1x256xf32> to vector<1x256xf32>
    %8 = vector.broadcast %7 : vector<1x256xf32> to vector<32x256xf32>
    %9 = arith.addf %5, %8 : vector<32x256xf32>
    %cst_8 = arith.constant 0.000000e+00 : f32
    %10 = vector.broadcast %cst_8 : f32 to vector<32x256xf32>
    %11 = arith.maximumf %9, %10 : vector<32x256xf32>
    %12 = arith.truncf %11 : vector<32x256xf32> to vector<32x256xbf16>
    %c0_9 = arith.constant 0 : index
    %c0_10 = arith.constant 0 : index
    %c0_11 = arith.constant 0 : index
    %13 = vector.load %arg4[%c0_9, %c0_10, %c0_11] : memref<4x256x128xbf16, #tpu.memory_space<vmem>>, vector<1x256x128xbf16>
    %14 = vector.shape_cast %13 : vector<1x256x128xbf16> to vector<256x128xbf16>
    %cst_12 = arith.constant dense<0.000000e+00> : vector<32x128xf32>
    %15 = tpu.matmul %12, %14, %cst_12 {dimension_numbers = #tpu.dot_dimension_numbers<[1], [0], [0], [1], [0, 0, 1, 1], [], []>} : vector<32x256xbf16>, vector<256x128xbf16>, vector<32x128xf32> -> vector<32x128xf32>
    %c0_13 = arith.constant 0 : index
    %c0_14 = arith.constant 0 : index
    %c0_15 = arith.constant 0 : index
    %16 = vector.load %arg5[%c0_13, %c0_14, %c0_15] : memref<4x1x128xf32, #tpu.memory_space<vmem>>, vector<1x1x128xf32>
    %17 = vector.shape_cast %16 : vector<1x1x128xf32> to vector<1x128xf32>
    %18 = vector.broadcast %17 : vector<1x128xf32> to vector<32x128xf32>
    %19 = arith.addf %15, %18 : vector<32x128xf32>
    %cst_16 = arith.constant 0.000000e+00 : f32
    %20 = vector.broadcast %cst_16 : f32 to vector<32x128xf32>
    %21 = arith.maximumf %19, %20 : vector<32x128xf32>
    %22 = arith.truncf %21 : vector<32x128xf32> to vector<32x128xbf16>
    %c0_17 = arith.constant 0 : index
    %c0_18 = arith.constant 0 : index
    %c0_19 = arith.constant 0 : index
    %23 = vector.load %arg6[%c0_17, %c0_18, %c0_19] : memref<4x128x64xbf16, #tpu.memory_space<vmem>>, vector<1x128x64xbf16>
    %24 = vector.shape_cast %23 : vector<1x128x64xbf16> to vector<128x64xbf16>
    %cst_20 = arith.constant dense<0.000000e+00> : vector<32x64xf32>
    %25 = tpu.matmul %22, %24, %cst_20 {dimension_numbers = #tpu.dot_dimension_numbers<[1], [0], [0], [1], [0, 0, 1, 1], [], []>} : vector<32x128xbf16>, vector<128x64xbf16>, vector<32x64xf32> -> vector<32x64xf32>
    %c0_21 = arith.constant 0 : index
    %c0_22 = arith.constant 0 : index
    %c0_23 = arith.constant 0 : index
    %26 = vector.load %arg7[%c0_21, %c0_22, %c0_23] : memref<4x1x64xf32, #tpu.memory_space<vmem>>, vector<1x1x64xf32>
    %27 = vector.shape_cast %26 : vector<1x1x64xf32> to vector<1x64xf32>
    %28 = vector.broadcast %27 : vector<1x64xf32> to vector<32x64xf32>
    %29 = arith.addf %25, %28 : vector<32x64xf32>
    %cst_24 = arith.constant 0.000000e+00 : f32
    %30 = vector.broadcast %cst_24 : f32 to vector<32x64xf32>
    %31 = arith.maximumf %29, %30 : vector<32x64xf32>
    %32 = arith.truncf %31 : vector<32x64xf32> to vector<32x64xbf16>
    %c0_25 = arith.constant 0 : index
    %c0_26 = arith.constant 0 : index
    %c0_27 = arith.constant 0 : index
    %33 = vector.load %arg8[%c0_25, %c0_26, %c0_27] : memref<4x64x128xbf16, #tpu.memory_space<vmem>>, vector<1x64x128xbf16>
    %34 = vector.shape_cast %33 : vector<1x64x128xbf16> to vector<64x128xbf16>
    %cst_28 = arith.constant dense<0.000000e+00> : vector<32x128xf32>
    %35 = tpu.matmul %32, %34, %cst_28 {dimension_numbers = #tpu.dot_dimension_numbers<[1], [0], [0], [1], [0, 0, 1, 1], [], []>} : vector<32x64xbf16>, vector<64x128xbf16>, vector<32x128xf32> -> vector<32x128xf32>
    %36 = arith.addf %0, %35 : vector<32x128xf32>
    %c0_29 = arith.constant 0 : index
    %c128 = arith.constant 128 : index
    %37 = vector.load %arg1[%c0_29, %c128] : memref<32x512xf32, #tpu.memory_space<vmem>>, vector<32x128xf32>
    %38 = arith.truncf %37 : vector<32x128xf32> to vector<32x128xbf16>
    %c1 = arith.constant 1 : index
    %c0_30 = arith.constant 0 : index
    %c0_31 = arith.constant 0 : index
    %39 = vector.load %arg2[%c1, %c0_30, %c0_31] : memref<4x128x256xbf16, #tpu.memory_space<vmem>>, vector<1x128x256xbf16>
    %40 = vector.shape_cast %39 : vector<1x128x256xbf16> to vector<128x256xbf16>
    %cst_32 = arith.constant dense<0.000000e+00> : vector<32x256xf32>
    %41 = tpu.matmul %38, %40, %cst_32 {dimension_numbers = #tpu.dot_dimension_numbers<[1], [0], [0], [1], [0, 0, 1, 1], [], []>} : vector<32x128xbf16>, vector<128x256xbf16>, vector<32x256xf32> -> vector<32x256xf32>
    %c1_33 = arith.constant 1 : index
    %c0_34 = arith.constant 0 : index
    %c0_35 = arith.constant 0 : index
    %42 = vector.load %arg3[%c1_33, %c0_34, %c0_35] : memref<4x1x256xf32, #tpu.memory_space<vmem>>, vector<1x1x256xf32>
    %43 = vector.shape_cast %42 : vector<1x1x256xf32> to vector<1x256xf32>
    %44 = vector.broadcast %43 : vector<1x256xf32> to vector<32x256xf32>
    %45 = arith.addf %41, %44 : vector<32x256xf32>
    %cst_36 = arith.constant 0.000000e+00 : f32
    %46 = vector.broadcast %cst_36 : f32 to vector<32x256xf32>
    %47 = arith.maximumf %45, %46 : vector<32x256xf32>
    %48 = arith.truncf %47 : vector<32x256xf32> to vector<32x256xbf16>
    %c1_37 = arith.constant 1 : index
    %c0_38 = arith.constant 0 : index
    %c0_39 = arith.constant 0 : index
    %49 = vector.load %arg4[%c1_37, %c0_38, %c0_39] : memref<4x256x128xbf16, #tpu.memory_space<vmem>>, vector<1x256x128xbf16>
    %50 = vector.shape_cast %49 : vector<1x256x128xbf16> to vector<256x128xbf16>
    %cst_40 = arith.constant dense<0.000000e+00> : vector<32x128xf32>
    %51 = tpu.matmul %48, %50, %cst_40 {dimension_numbers = #tpu.dot_dimension_numbers<[1], [0], [0], [1], [0, 0, 1, 1], [], []>} : vector<32x256xbf16>, vector<256x128xbf16>, vector<32x128xf32> -> vector<32x128xf32>
    %c1_41 = arith.constant 1 : index
    %c0_42 = arith.constant 0 : index
    %c0_43 = arith.constant 0 : index
    %52 = vector.load %arg5[%c1_41, %c0_42, %c0_43] : memref<4x1x128xf32, #tpu.memory_space<vmem>>, vector<1x1x128xf32>
    %53 = vector.shape_cast %52 : vector<1x1x128xf32> to vector<1x128xf32>
    %54 = vector.broadcast %53 : vector<1x128xf32> to vector<32x128xf32>
    %55 = arith.addf %51, %54 : vector<32x128xf32>
    %cst_44 = arith.constant 0.000000e+00 : f32
    %56 = vector.broadcast %cst_44 : f32 to vector<32x128xf32>
    %57 = arith.maximumf %55, %56 : vector<32x128xf32>
    %58 = arith.truncf %57 : vector<32x128xf32> to vector<32x128xbf16>
    %c1_45 = arith.constant 1 : index
    %c0_46 = arith.constant 0 : index
    %c0_47 = arith.constant 0 : index
    %59 = vector.load %arg6[%c1_45, %c0_46, %c0_47] : memref<4x128x64xbf16, #tpu.memory_space<vmem>>, vector<1x128x64xbf16>
    %60 = vector.shape_cast %59 : vector<1x128x64xbf16> to vector<128x64xbf16>
    %cst_48 = arith.constant dense<0.000000e+00> : vector<32x64xf32>
    %61 = tpu.matmul %58, %60, %cst_48 {dimension_numbers = #tpu.dot_dimension_numbers<[1], [0], [0], [1], [0, 0, 1, 1], [], []>} : vector<32x128xbf16>, vector<128x64xbf16>, vector<32x64xf32> -> vector<32x64xf32>
    %c1_49 = arith.constant 1 : index
    %c0_50 = arith.constant 0 : index
    %c0_51 = arith.constant 0 : index
    %62 = vector.load %arg7[%c1_49, %c0_50, %c0_51] : memref<4x1x64xf32, #tpu.memory_space<vmem>>, vector<1x1x64xf32>
    %63 = vector.shape_cast %62 : vector<1x1x64xf32> to vector<1x64xf32>
    %64 = vector.broadcast %63 : vector<1x64xf32> to vector<32x64xf32>
    %65 = arith.addf %61, %64 : vector<32x64xf32>
    %cst_52 = arith.constant 0.000000e+00 : f32
    %66 = vector.broadcast %cst_52 : f32 to vector<32x64xf32>
    %67 = arith.maximumf %65, %66 : vector<32x64xf32>
    %68 = arith.truncf %67 : vector<32x64xf32> to vector<32x64xbf16>
    %c1_53 = arith.constant 1 : index
    %c0_54 = arith.constant 0 : index
    %c0_55 = arith.constant 0 : index
    %69 = vector.load %arg8[%c1_53, %c0_54, %c0_55] : memref<4x64x128xbf16, #tpu.memory_space<vmem>>, vector<1x64x128xbf16>
    %70 = vector.shape_cast %69 : vector<1x64x128xbf16> to vector<64x128xbf16>
    %cst_56 = arith.constant dense<0.000000e+00> : vector<32x128xf32>
    %71 = tpu.matmul %68, %70, %cst_56 {dimension_numbers = #tpu.dot_dimension_numbers<[1], [0], [0], [1], [0, 0, 1, 1], [], []>} : vector<32x64xbf16>, vector<64x128xbf16>, vector<32x128xf32> -> vector<32x128xf32>
    %72 = arith.addf %36, %71 : vector<32x128xf32>
    %c0_57 = arith.constant 0 : index
    %c256 = arith.constant 256 : index
    %73 = vector.load %arg1[%c0_57, %c256] : memref<32x512xf32, #tpu.memory_space<vmem>>, vector<32x128xf32>
    %74 = arith.truncf %73 : vector<32x128xf32> to vector<32x128xbf16>
    %c2 = arith.constant 2 : index
    %c0_58 = arith.constant 0 : index
    %c0_59 = arith.constant 0 : index
    %75 = vector.load %arg2[%c2, %c0_58, %c0_59] : memref<4x128x256xbf16, #tpu.memory_space<vmem>>, vector<1x128x256xbf16>
    %76 = vector.shape_cast %75 : vector<1x128x256xbf16> to vector<128x256xbf16>
    %cst_60 = arith.constant dense<0.000000e+00> : vector<32x256xf32>
    %77 = tpu.matmul %74, %76, %cst_60 {dimension_numbers = #tpu.dot_dimension_numbers<[1], [0], [0], [1], [0, 0, 1, 1], [], []>} : vector<32x128xbf16>, vector<128x256xbf16>, vector<32x256xf32> -> vector<32x256xf32>
    %c2_61 = arith.constant 2 : index
    %c0_62 = arith.constant 0 : index
    %c0_63 = arith.constant 0 : index
    %78 = vector.load %arg3[%c2_61, %c0_62, %c0_63] : memref<4x1x256xf32, #tpu.memory_space<vmem>>, vector<1x1x256xf32>
    %79 = vector.shape_cast %78 : vector<1x1x256xf32> to vector<1x256xf32>
    %80 = vector.broadcast %79 : vector<1x256xf32> to vector<32x256xf32>
    %81 = arith.addf %77, %80 : vector<32x256xf32>
    %cst_64 = arith.constant 0.000000e+00 : f32
    %82 = vector.broadcast %cst_64 : f32 to vector<32x256xf32>
    %83 = arith.maximumf %81, %82 : vector<32x256xf32>
    %84 = arith.truncf %83 : vector<32x256xf32> to vector<32x256xbf16>
    %c2_65 = arith.constant 2 : index
    %c0_66 = arith.constant 0 : index
    %c0_67 = arith.constant 0 : index
    %85 = vector.load %arg4[%c2_65, %c0_66, %c0_67] : memref<4x256x128xbf16, #tpu.memory_space<vmem>>, vector<1x256x128xbf16>
    %86 = vector.shape_cast %85 : vector<1x256x128xbf16> to vector<256x128xbf16>
    %cst_68 = arith.constant dense<0.000000e+00> : vector<32x128xf32>
    %87 = tpu.matmul %84, %86, %cst_68 {dimension_numbers = #tpu.dot_dimension_numbers<[1], [0], [0], [1], [0, 0, 1, 1], [], []>} : vector<32x256xbf16>, vector<256x128xbf16>, vector<32x128xf32> -> vector<32x128xf32>
    %c2_69 = arith.constant 2 : index
    %c0_70 = arith.constant 0 : index
    %c0_71 = arith.constant 0 : index
    %88 = vector.load %arg5[%c2_69, %c0_70, %c0_71] : memref<4x1x128xf32, #tpu.memory_space<vmem>>, vector<1x1x128xf32>
    %89 = vector.shape_cast %88 : vector<1x1x128xf32> to vector<1x128xf32>
    %90 = vector.broadcast %89 : vector<1x128xf32> to vector<32x128xf32>
    %91 = arith.addf %87, %90 : vector<32x128xf32>
    %cst_72 = arith.constant 0.000000e+00 : f32
    %92 = vector.broadcast %cst_72 : f32 to vector<32x128xf32>
    %93 = arith.maximumf %91, %92 : vector<32x128xf32>
    %94 = arith.truncf %93 : vector<32x128xf32> to vector<32x128xbf16>
    %c2_73 = arith.constant 2 : index
    %c0_74 = arith.constant 0 : index
    %c0_75 = arith.constant 0 : index
    %95 = vector.load %arg6[%c2_73, %c0_74, %c0_75] : memref<4x128x64xbf16, #tpu.memory_space<vmem>>, vector<1x128x64xbf16>
    %96 = vector.shape_cast %95 : vector<1x128x64xbf16> to vector<128x64xbf16>
    %cst_76 = arith.constant dense<0.000000e+00> : vector<32x64xf32>
    %97 = tpu.matmul %94, %96, %cst_76 {dimension_numbers = #tpu.dot_dimension_numbers<[1], [0], [0], [1], [0, 0, 1, 1], [], []>} : vector<32x128xbf16>, vector<128x64xbf16>, vector<32x64xf32> -> vector<32x64xf32>
    %c2_77 = arith.constant 2 : index
    %c0_78 = arith.constant 0 : index
    %c0_79 = arith.constant 0 : index
    %98 = vector.load %arg7[%c2_77, %c0_78, %c0_79] : memref<4x1x64xf32, #tpu.memory_space<vmem>>, vector<1x1x64xf32>
    %99 = vector.shape_cast %98 : vector<1x1x64xf32> to vector<1x64xf32>
    %100 = vector.broadcast %99 : vector<1x64xf32> to vector<32x64xf32>
    %101 = arith.addf %97, %100 : vector<32x64xf32>
    %cst_80 = arith.constant 0.000000e+00 : f32
    %102 = vector.broadcast %cst_80 : f32 to vector<32x64xf32>
    %103 = arith.maximumf %101, %102 : vector<32x64xf32>
    %104 = arith.truncf %103 : vector<32x64xf32> to vector<32x64xbf16>
    %c2_81 = arith.constant 2 : index
    %c0_82 = arith.constant 0 : index
    %c0_83 = arith.constant 0 : index
    %105 = vector.load %arg8[%c2_81, %c0_82, %c0_83] : memref<4x64x128xbf16, #tpu.memory_space<vmem>>, vector<1x64x128xbf16>
    %106 = vector.shape_cast %105 : vector<1x64x128xbf16> to vector<64x128xbf16>
    %cst_84 = arith.constant dense<0.000000e+00> : vector<32x128xf32>
    %107 = tpu.matmul %104, %106, %cst_84 {dimension_numbers = #tpu.dot_dimension_numbers<[1], [0], [0], [1], [0, 0, 1, 1], [], []>} : vector<32x64xbf16>, vector<64x128xbf16>, vector<32x128xf32> -> vector<32x128xf32>
    %108 = arith.addf %72, %107 : vector<32x128xf32>
    %c0_85 = arith.constant 0 : index
    %c384 = arith.constant 384 : index
    %109 = vector.load %arg1[%c0_85, %c384] : memref<32x512xf32, #tpu.memory_space<vmem>>, vector<32x128xf32>
    %110 = arith.truncf %109 : vector<32x128xf32> to vector<32x128xbf16>
    %c3 = arith.constant 3 : index
    %c0_86 = arith.constant 0 : index
    %c0_87 = arith.constant 0 : index
    %111 = vector.load %arg2[%c3, %c0_86, %c0_87] : memref<4x128x256xbf16, #tpu.memory_space<vmem>>, vector<1x128x256xbf16>
    %112 = vector.shape_cast %111 : vector<1x128x256xbf16> to vector<128x256xbf16>
    %cst_88 = arith.constant dense<0.000000e+00> : vector<32x256xf32>
    %113 = tpu.matmul %110, %112, %cst_88 {dimension_numbers = #tpu.dot_dimension_numbers<[1], [0], [0], [1], [0, 0, 1, 1], [], []>} : vector<32x128xbf16>, vector<128x256xbf16>, vector<32x256xf32> -> vector<32x256xf32>
    %c3_89 = arith.constant 3 : index
    %c0_90 = arith.constant 0 : index
    %c0_91 = arith.constant 0 : index
    %114 = vector.load %arg3[%c3_89, %c0_90, %c0_91] : memref<4x1x256xf32, #tpu.memory_space<vmem>>, vector<1x1x256xf32>
    %115 = vector.shape_cast %114 : vector<1x1x256xf32> to vector<1x256xf32>
    %116 = vector.broadcast %115 : vector<1x256xf32> to vector<32x256xf32>
    %117 = arith.addf %113, %116 : vector<32x256xf32>
    %cst_92 = arith.constant 0.000000e+00 : f32
    %118 = vector.broadcast %cst_92 : f32 to vector<32x256xf32>
    %119 = arith.maximumf %117, %118 : vector<32x256xf32>
    %120 = arith.truncf %119 : vector<32x256xf32> to vector<32x256xbf16>
    %c3_93 = arith.constant 3 : index
    %c0_94 = arith.constant 0 : index
    %c0_95 = arith.constant 0 : index
    %121 = vector.load %arg4[%c3_93, %c0_94, %c0_95] : memref<4x256x128xbf16, #tpu.memory_space<vmem>>, vector<1x256x128xbf16>
    %122 = vector.shape_cast %121 : vector<1x256x128xbf16> to vector<256x128xbf16>
    %cst_96 = arith.constant dense<0.000000e+00> : vector<32x128xf32>
    %123 = tpu.matmul %120, %122, %cst_96 {dimension_numbers = #tpu.dot_dimension_numbers<[1], [0], [0], [1], [0, 0, 1, 1], [], []>} : vector<32x256xbf16>, vector<256x128xbf16>, vector<32x128xf32> -> vector<32x128xf32>
    %c3_97 = arith.constant 3 : index
    %c0_98 = arith.constant 0 : index
    %c0_99 = arith.constant 0 : index
    %124 = vector.load %arg5[%c3_97, %c0_98, %c0_99] : memref<4x1x128xf32, #tpu.memory_space<vmem>>, vector<1x1x128xf32>
    %125 = vector.shape_cast %124 : vector<1x1x128xf32> to vector<1x128xf32>
    %126 = vector.broadcast %125 : vector<1x128xf32> to vector<32x128xf32>
    %127 = arith.addf %123, %126 : vector<32x128xf32>
    %cst_100 = arith.constant 0.000000e+00 : f32
    %128 = vector.broadcast %cst_100 : f32 to vector<32x128xf32>
    %129 = arith.maximumf %127, %128 : vector<32x128xf32>
    %130 = arith.truncf %129 : vector<32x128xf32> to vector<32x128xbf16>
    %c3_101 = arith.constant 3 : index
    %c0_102 = arith.constant 0 : index
    %c0_103 = arith.constant 0 : index
    %131 = vector.load %arg6[%c3_101, %c0_102, %c0_103] : memref<4x128x64xbf16, #tpu.memory_space<vmem>>, vector<1x128x64xbf16>
    %132 = vector.shape_cast %131 : vector<1x128x64xbf16> to vector<128x64xbf16>
    %cst_104 = arith.constant dense<0.000000e+00> : vector<32x64xf32>
    %133 = tpu.matmul %130, %132, %cst_104 {dimension_numbers = #tpu.dot_dimension_numbers<[1], [0], [0], [1], [0, 0, 1, 1], [], []>} : vector<32x128xbf16>, vector<128x64xbf16>, vector<32x64xf32> -> vector<32x64xf32>
    %c3_105 = arith.constant 3 : index
    %c0_106 = arith.constant 0 : index
    %c0_107 = arith.constant 0 : index
    %134 = vector.load %arg7[%c3_105, %c0_106, %c0_107] : memref<4x1x64xf32, #tpu.memory_space<vmem>>, vector<1x1x64xf32>
    %135 = vector.shape_cast %134 : vector<1x1x64xf32> to vector<1x64xf32>
    %136 = vector.broadcast %135 : vector<1x64xf32> to vector<32x64xf32>
    %137 = arith.addf %133, %136 : vector<32x64xf32>
    %cst_108 = arith.constant 0.000000e+00 : f32
    %138 = vector.broadcast %cst_108 : f32 to vector<32x64xf32>
    %139 = arith.maximumf %137, %138 : vector<32x64xf32>
    %140 = arith.truncf %139 : vector<32x64xf32> to vector<32x64xbf16>
    %c3_109 = arith.constant 3 : index
    %c0_110 = arith.constant 0 : index
    %c0_111 = arith.constant 0 : index
    %141 = vector.load %arg8[%c3_109, %c0_110, %c0_111] : memref<4x64x128xbf16, #tpu.memory_space<vmem>>, vector<1x64x128xbf16>
    %142 = vector.shape_cast %141 : vector<1x64x128xbf16> to vector<64x128xbf16>
    %cst_112 = arith.constant dense<0.000000e+00> : vector<32x128xf32>
    %143 = tpu.matmul %140, %142, %cst_112 {dimension_numbers = #tpu.dot_dimension_numbers<[1], [0], [0], [1], [0, 0, 1, 1], [], []>} : vector<32x64xbf16>, vector<64x128xbf16>, vector<32x128xf32> -> vector<32x128xf32>
    %144 = arith.addf %108, %143 : vector<32x128xf32>
    %c0_113 = arith.constant 0 : index
    %c0_114 = arith.constant 0 : index
    %145 = vector.load %arg9[%c0_113, %c0_114] : memref<1x128xf32, #tpu.memory_space<vmem>>, vector<1x128xf32>
    %146 = vector.broadcast %145 : vector<1x128xf32> to vector<32x128xf32>
    %147 = arith.addf %144, %146 : vector<32x128xf32>
    %cst_115 = arith.constant 0.000000e+00 : f32
    %148 = vector.broadcast %cst_115 : f32 to vector<32x128xf32>
    %149 = arith.maximumf %147, %148 : vector<32x128xf32>
    %150 = arith.truncf %149 : vector<32x128xf32> to vector<32x128xbf16>
    %c0_116 = arith.constant 0 : index
    %c0_117 = arith.constant 0 : index
    %151 = vector.load %arg10[%c0_116, %c0_117] : memref<128x128xbf16, #tpu.memory_space<vmem>>, vector<128x128xbf16>
    %cst_118 = arith.constant dense<0.000000e+00> : vector<32x128xf32>
    %152 = tpu.matmul %150, %151, %cst_118 {dimension_numbers = #tpu.dot_dimension_numbers<[1], [0], [0], [1], [0, 0, 1, 1], [], []>} : vector<32x128xbf16>, vector<128x128xbf16>, vector<32x128xf32> -> vector<32x128xf32>
    %c0_119 = arith.constant 0 : index
    %c0_120 = arith.constant 0 : index
    %153 = vector.load %arg11[%c0_119, %c0_120] : memref<1x128xf32, #tpu.memory_space<vmem>>, vector<1x128xf32>
    %154 = vector.broadcast %153 : vector<1x128xf32> to vector<32x128xf32>
    %155 = arith.addf %152, %154 : vector<32x128xf32>
    %c0_121 = arith.constant 0 : index
    %c0_122 = arith.constant 0 : index
    %156 = vector.load %arg12[%c0_121, %c0_122] : memref<32x128xf32, #tpu.memory_space<vmem>>, vector<32x128xf32>
    tpu.vector_store %arg12[%c0_121, %c0_122], %155 {strides = array<i32>} : memref<32x128xf32, #tpu.memory_space<vmem>>, vector<32x128xf32>,
    return
  }
  func.func @transform_0(%arg0: i32) -> (i32, i32) {
    %c0_i32 = arith.constant 0 : i32
    %c0_i32_0 = arith.constant 0 : i32
    return %arg0, %c0_i32 : i32, i32
  }
  func.func @transform_1(%arg0: i32) -> (i32, i32, i32) {
    %c0_i32 = arith.constant 0 : i32
    %c0_i32_0 = arith.constant 0 : i32
    %c0_i32_1 = arith.constant 0 : i32
    %c0_i32_2 = arith.constant 0 : i32
    return %c0_i32, %c0_i32_0, %c0_i32_1 : i32, i32, i32
  }
  func.func @transform_2(%arg0: i32) -> (i32, i32, i32) {
    %c0_i32 = arith.constant 0 : i32
    %c0_i32_0 = arith.constant 0 : i32
    %c0_i32_1 = arith.constant 0 : i32
    %c0_i32_2 = arith.constant 0 : i32
    return %c0_i32, %c0_i32_0, %c0_i32_1 : i32, i32, i32
  }
  func.func @transform_3(%arg0: i32) -> (i32, i32, i32) {
    %c0_i32 = arith.constant 0 : i32
    %c0_i32_0 = arith.constant 0 : i32
    %c0_i32_1 = arith.constant 0 : i32
    %c0_i32_2 = arith.constant 0 : i32
    return %c0_i32, %c0_i32_0, %c0_i32_1 : i32, i32, i32
  }
  func.func @transform_4(%arg0: i32) -> (i32, i32, i32) {
    %c0_i32 = arith.constant 0 : i32
    %c0_i32_0 = arith.constant 0 : i32
    %c0_i32_1 = arith.constant 0 : i32
    %c0_i32_2 = arith.constant 0 : i32
    return %c0_i32, %c0_i32_0, %c0_i32_1 : i32, i32, i32
  }
  func.func @transform_5(%arg0: i32) -> (i32, i32, i32) {
    %c0_i32 = arith.constant 0 : i32
    %c0_i32_0 = arith.constant 0 : i32
    %c0_i32_1 = arith.constant 0 : i32
    %c0_i32_2 = arith.constant 0 : i32
    return %c0_i32, %c0_i32_0, %c0_i32_1 : i32, i32, i32
  }
  func.func @transform_6(%arg0: i32) -> (i32, i32, i32) {
    %c0_i32 = arith.constant 0 : i32
    %c0_i32_0 = arith.constant 0 : i32
    %c0_i32_1 = arith.constant 0 : i32
    %c0_i32_2 = arith.constant 0 : i32
    return %c0_i32, %c0_i32_0, %c0_i32_1 : i32, i32, i32
  }
  func.func @transform_7(%arg0: i32) -> (i32, i32, i32) {
    %c0_i32 = arith.constant 0 : i32
    %c0_i32_0 = arith.constant 0 : i32
    %c0_i32_1 = arith.constant 0 : i32
    %c0_i32_2 = arith.constant 0 : i32
    return %c0_i32, %c0_i32_0, %c0_i32_1 : i32, i32, i32
  }
  func.func @transform_8(%arg0: i32) -> (i32, i32) {
    %c0_i32 = arith.constant 0 : i32
    %c0_i32_0 = arith.constant 0 : i32
    %c0_i32_1 = arith.constant 0 : i32
    return %c0_i32, %c0_i32_0 : i32, i32
  }
  func.func @transform_9(%arg0: i32) -> (i32, i32) {
    %c0_i32 = arith.constant 0 : i32
    %c0_i32_0 = arith.constant 0 : i32
    %c0_i32_1 = arith.constant 0 : i32
    return %c0_i32, %c0_i32_0 : i32, i32
  }
  func.func @transform_10(%arg0: i32) -> (i32, i32) {
    %c0_i32 = arith.constant 0 : i32
    %c0_i32_0 = arith.constant 0 : i32
    %c0_i32_1 = arith.constant 0 : i32
    return %c0_i32, %c0_i32_0 : i32, i32
  }
  func.func @transform_11(%arg0: i32) -> (i32, i32) {
    %c0_i32 = arith.constant 0 : i32
    %c0_i32_0 = arith.constant 0 : i32
    return %arg0, %c0_i32 : i32, i32
  }
}

</mosaic_0001>

<llo_original>
// kernel: multinet_forward.1
$region0: #{multinet_forward.1}
  #allocation0 [shape = 'u32[]', space=smem, size = 0x4, offset = 0x4, fixed_abs, tag = 'smem constant byte address 0x4 - core index']
  #allocation1 [shape = 'u32[144,128]{1,0:T(1,128)}', space=vmem, size = 0x12000, scoped, tag = 'internal scratch']
  %s0 = inlined_call_operand.vmem [shape: f32[64,512], index: 0, kind: input, shape index: {}]
  %s1 = inlined_call_operand.vmem [shape: bf16[4,128,256], index: 1, kind: input, shape index: {}]
  %s2 = inlined_call_operand.vmem [shape: f32[4,1,256], index: 2, kind: input, shape index: {}]
  %s3 = inlined_call_operand.hbm [shape: bf16[4,256,128], index: 3, kind: input, shape index: {}]
  %s4 = inlined_call_operand.vmem [shape: f32[4,1,128], index: 4, kind: input, shape index: {}]
  %s5 = inlined_call_operand.vmem [shape: bf16[4,128,64], index: 5, kind: input, shape index: {}]
  %s6 = inlined_call_operand.vmem [shape: f32[4,1,64], index: 6, kind: input, shape index: {}]
  %s7 = inlined_call_operand.vmem [shape: bf16[4,64,128], index: 7, kind: input, shape index: {}]
  %s8 = inlined_call_operand.vmem [shape: f32[1,128], index: 8, kind: input, shape index: {}]
  %s9 = inlined_call_operand.vmem [shape: bf16[128,128], index: 9, kind: input, shape index: {}]
  %s10 = inlined_call_operand.vmem [shape: f32[1,128], index: 10, kind: input, shape index: {}]
  %s11 = inlined_call_operand.vmem [shape: f32[64,128], index: 11, kind: output, shape index: {}]
  %s12 = sld [smem:[#allocation0]]
  $region81: #{multinet_forward.1} parent=0
    _
  %s14 = ssub.s32 1, %s12
  %s15 = scalar_select 0, %s14, %s12
  $region1: #{multinet_forward.1} parent=0
    #allocation2 [shape = 'u8[262144]{0}', space=vmem, size = 0x40000, scoped, tag = 'input window, operand 3, single buffered']
    #allocation3 [shape = 's32[2]{0}', space=sflag, size = 0x8, scoped, tag = 'scoped memory for multinet_forward.1']
    %16 = vsyncpa [#allocation3], 0
    loop: start=0, step=1, limit=4
    $region2: #{multinet_forward.1} parent=1 // loop_pre_header
      _
    $region3: #{multinet_forward.1} parent=1 // loop_header
      %s18 = sphi 0, %s22
      %p19 = scmp.ge.s32.totalorder %s18, 4
      %s28 = sphi 0, %s30
      %s31 = sphi 0, %s28
      %s32 = sphi 0, %s31
      %s48 = sphi 0, %s32
      %s52 = sphi 0, %s52
      %s54 = sphi 0, %s52
      %s55 = sphi 0, %s54
      %s69 = sphi 0, %s55
      %s73 = sphi 0, %s73
      %s75 = sphi 0, %s73
      %s76 = sphi 0, %s75
      %s90 = sphi 0, %s76
      %s94 = sphi 0, %s94
      %s96 = sphi 0, %s94
      %s97 = sphi 0, %s96
      %s111 = sphi 0, %s97
      %s115 = sphi 0, %s115
      %s117 = sphi 0, %s115
      %s118 = sphi 0, %s117
      %s132 = sphi 0, %s118
      %s136 = sphi 0, %s136
      %s138 = sphi 0, %s136
      %s139 = sphi 0, %s138
      %s153 = sphi 0, %s139
      %s157 = sphi 0, %s157
      %s159 = sphi 0, %s157
      %s160 = sphi 0, %s159
      %s174 = sphi 0, %s160
      %s178 = sphi 0, %s178
      %s180 = sphi 0, %s178
      %s181 = sphi 0, %s180
      %s195 = sphi 0, %s181
      %s199 = sphi 0, %s199
      %s201 = sphi 0, %s199
      %s202 = sphi 0, %s201
      %s216 = sphi 0, %s202
      %s220 = sphi 0, %s220
      %s222 = sphi 0, %s220
      %s223 = sphi 0, %s222
      %s237 = sphi 0, %s223
      %s241 = sphi 0, %s241
      %s243 = sphi 0, %s241
      %s244 = sphi 0, %s243
      %s258 = sphi 0, %s244
      %s264 = sphi 0, %s266
      %s267 = sphi 0, %s264
      %s268 = sphi 0, %s267
      %s284 = sphi 0, %s268
    $region4: #{multinet_forward.1} parent=1 // loop_header_branch
      %21 = sbr.rel (%p19) target = $region8
    $region5: #{multinet_forward.1} parent=1 // loop_body
      %s23 = ssub.s32 %s18, 1
      %s24 = ssub.s32 %s18, 2
      %s25 = sadd.s32 %s18, 1
      %s26 = ssub.s32 %s18, %s25
      %p27 = scmp.eq.s32.totalorder %s26, 0
      %s29 = sadd.s32 %s28, 1
      %s30 = scalar_select %p27, %s28, %s29
      %p33 = pneg %p27
      %p34 = scmp.eq.s32.totalorder %s18, 1
      %p35 = por %p33, %p34
      %p36 = scmp.ne.s32.totalorder %s28, %s31
      %p37 = scmp.eq.s32.totalorder %s18, 0
      %p38 = por %p36, %p37
      %p39 = scmp.ne.s32.totalorder %s28, %s31
      %p40 = scmp.eq.s32.totalorder %s23, 1
      %p41 = por %p39, %p40
      %p42 = scmp.ne.s32.totalorder %s31, %s32
      %p43 = scmp.eq.s32.totalorder %s23, 0
      %p44 = por %p42, %p43
      %p45 = scmp.ne.s32.totalorder %s31, %s32
      %p46 = scmp.eq.s32.totalorder %s24, 1
      %p47 = por %p45, %p46
      %p49 = scmp.ne.s32.totalorder %s32, %s48
      %p50 = scmp.eq.s32.totalorder %s24, 0
      %p51 = por %p49, %p50
      %s53 = sadd.s32 %s52, 1
      %p56 = scmp.eq.s32.totalorder %s18, 1
      %p57 = scmp.ne.s32.totalorder %s52, %s54
      %p58 = scmp.eq.s32.totalorder %s18, 0
      %p59 = por %p57, %p58
      %p60 = scmp.ne.s32.totalorder %s52, %s54
      %p61 = scmp.eq.s32.totalorder %s23, 1
      %p62 = por %p60, %p61
      %p63 = scmp.ne.s32.totalorder %s54, %s55
      %p64 = scmp.eq.s32.totalorder %s23, 0
      %p65 = por %p63, %p64
      %p66 = scmp.ne.s32.totalorder %s54, %s55
      %p67 = scmp.eq.s32.totalorder %s24, 1
      %p68 = por %p66, %p67
      %p70 = scmp.ne.s32.totalorder %s55, %s69
      %p71 = scmp.eq.s32.totalorder %s24, 0
      %p72 = por %p70, %p71
      %s74 = sadd.s32 %s73, 1
      %p77 = scmp.eq.s32.totalorder %s18, 1
      %p78 = scmp.ne.s32.totalorder %s73, %s75
      %p79 = scmp.eq.s32.totalorder %s18, 0
      %p80 = por %p78, %p79
      %p81 = scmp.ne.s32.totalorder %s73, %s75
      %p82 = scmp.eq.s32.totalorder %s23, 1
      %p83 = por %p81, %p82
      %p84 = scmp.ne.s32.totalorder %s75, %s76
      %p85 = scmp.eq.s32.totalorder %s23, 0
      %p86 = por %p84, %p85
      %p87 = scmp.ne.s32.totalorder %s75, %s76
      %p88 = scmp.eq.s32.totalorder %s24, 1
      %p89 = por %p87, %p88
      %p91 = scmp.ne.s32.totalorder %s76, %s90
      %p92 = scmp.eq.s32.totalorder %s24, 0
      %p93 = por %p91, %p92
      %s95 = sadd.s32 %s94, 1
      %p98 = scmp.eq.s32.totalorder %s18, 1
      %p99 = scmp.ne.s32.totalorder %s94, %s96
      %p100 = scmp.eq.s32.totalorder %s18, 0
      %p101 = por %p99, %p100
      %p102 = scmp.ne.s32.totalorder %s94, %s96
      %p103 = scmp.eq.s32.totalorder %s23, 1
      %p104 = por %p102, %p103
      %p105 = scmp.ne.s32.totalorder %s96, %s97
      %p106 = scmp.eq.s32.totalorder %s23, 0
      %p107 = por %p105, %p106
      %p108 = scmp.ne.s32.totalorder %s96, %s97
      %p109 = scmp.eq.s32.totalorder %s24, 1
      %p110 = por %p108, %p109
      %p112 = scmp.ne.s32.totalorder %s97, %s111
      %p113 = scmp.eq.s32.totalorder %s24, 0
      %p114 = por %p112, %p113
      %s116 = sadd.s32 %s115, 1
      %p119 = scmp.eq.s32.totalorder %s18, 1
      %p120 = scmp.ne.s32.totalorder %s115, %s117
      %p121 = scmp.eq.s32.totalorder %s18, 0
      %p122 = por %p120, %p121
      %p123 = scmp.ne.s32.totalorder %s115, %s117
      %p124 = scmp.eq.s32.totalorder %s23, 1
      %p125 = por %p123, %p124
      %p126 = scmp.ne.s32.totalorder %s117, %s118
      %p127 = scmp.eq.s32.totalorder %s23, 0
      %p128 = por %p126, %p127
      %p129 = scmp.ne.s32.totalorder %s117, %s118
      %p130 = scmp.eq.s32.totalorder %s24, 1
      %p131 = por %p129, %p130
      %p133 = scmp.ne.s32.totalorder %s118, %s132
      %p134 = scmp.eq.s32.totalorder %s24, 0
      %p135 = por %p133, %p134
      %s137 = sadd.s32 %s136, 1
      %p140 = scmp.eq.s32.totalorder %s18, 1
      %p141 = scmp.ne.s32.totalorder %s136, %s138
      %p142 = scmp.eq.s32.totalorder %s18, 0
      %p143 = por %p141, %p142
      %p144 = scmp.ne.s32.totalorder %s136, %s138
      %p145 = scmp.eq.s32.totalorder %s23, 1
      %p146 = por %p144, %p145
      %p147 = scmp.ne.s32.totalorder %s138, %s139
      %p148 = scmp.eq.s32.totalorder %s23, 0
      %p149 = por %p147, %p148
      %p150 = scmp.ne.s32.totalorder %s138, %s139
      %p151 = scmp.eq.s32.totalorder %s24, 1
      %p152 = por %p150, %p151
      %p154 = scmp.ne.s32.totalorder %s139, %s153
      %p155 = scmp.eq.s32.totalorder %s24, 0
      %p156 = por %p154, %p155
      %s158 = sadd.s32 %s157, 1
      %p161 = scmp.eq.s32.totalorder %s18, 1
      %p162 = scmp.ne.s32.totalorder %s157, %s159
      %p163 = scmp.eq.s32.totalorder %s18, 0
      %p164 = por %p162, %p163
      %p165 = scmp.ne.s32.totalorder %s157, %s159
      %p166 = scmp.eq.s32.totalorder %s23, 1
      %p167 = por %p165, %p166
      %p168 = scmp.ne.s32.totalorder %s159, %s160
      %p169 = scmp.eq.s32.totalorder %s23, 0
      %p170 = por %p168, %p169
      %p171 = scmp.ne.s32.totalorder %s159, %s160
      %p172 = scmp.eq.s32.totalorder %s24, 1
      %p173 = por %p171, %p172
      %p175 = scmp.ne.s32.totalorder %s160, %s174
      %p176 = scmp.eq.s32.totalorder %s24, 0
      %p177 = por %p175, %p176
      %s179 = sadd.s32 %s178, 1
      %p182 = scmp.eq.s32.totalorder %s18, 1
      %p183 = scmp.ne.s32.totalorder %s178, %s180
      %p184 = scmp.eq.s32.totalorder %s18, 0
      %p185 = por %p183, %p184
      %p186 = scmp.ne.s32.totalorder %s178, %s180
      %p187 = scmp.eq.s32.totalorder %s23, 1
      %p188 = por %p186, %p187
      %p189 = scmp.ne.s32.totalorder %s180, %s181
      %p190 = scmp.eq.s32.totalorder %s23, 0
      %p191 = por %p189, %p190
      %p192 = scmp.ne.s32.totalorder %s180, %s181
      %p193 = scmp.eq.s32.totalorder %s24, 1
      %p194 = por %p192, %p193
      %p196 = scmp.ne.s32.totalorder %s181, %s195
      %p197 = scmp.eq.s32.totalorder %s24, 0
      %p198 = por %p196, %p197
      %s200 = sadd.s32 %s199, 1
      %p203 = scmp.eq.s32.totalorder %s18, 1
      %p204 = scmp.ne.s32.totalorder %s199, %s201
      %p205 = scmp.eq.s32.totalorder %s18, 0
      %p206 = por %p204, %p205
      %p207 = scmp.ne.s32.totalorder %s199, %s201
      %p208 = scmp.eq.s32.totalorder %s23, 1
      %p209 = por %p207, %p208
      %p210 = scmp.ne.s32.totalorder %s201, %s202
      %p211 = scmp.eq.s32.totalorder %s23, 0
      %p212 = por %p210, %p211
      %p213 = scmp.ne.s32.totalorder %s201, %s202
      %p214 = scmp.eq.s32.totalorder %s24, 1
      %p215 = por %p213, %p214
      %p217 = scmp.ne.s32.totalorder %s202, %s216
      %p218 = scmp.eq.s32.totalorder %s24, 0
      %p219 = por %p217, %p218
      %s221 = sadd.s32 %s220, 1
      %p224 = scmp.eq.s32.totalorder %s18, 1
      %p225 = scmp.ne.s32.totalorder %s220, %s222
      %p226 = scmp.eq.s32.totalorder %s18, 0
      %p227 = por %p225, %p226
      %p228 = scmp.ne.s32.totalorder %s220, %s222
      %p229 = scmp.eq.s32.totalorder %s23, 1
      %p230 = por %p228, %p229
      %p231 = scmp.ne.s32.totalorder %s222, %s223
      %p232 = scmp.eq.s32.totalorder %s23, 0
      %p233 = por %p231, %p232
      %p234 = scmp.ne.s32.totalorder %s222, %s223
      %p235 = scmp.eq.s32.totalorder %s24, 1
      %p236 = por %p234, %p235
      %p238 = scmp.ne.s32.totalorder %s223, %s237
      %p239 = scmp.eq.s32.totalorder %s24, 0
      %p240 = por %p238, %p239
      %s242 = sadd.s32 %s241, 1
      %p245 = scmp.eq.s32.totalorder %s18, 1
      %p246 = scmp.ne.s32.totalorder %s241, %s243
      %p247 = scmp.eq.s32.totalorder %s18, 0
      %p248 = por %p246, %p247
      %p249 = scmp.ne.s32.totalorder %s241, %s243
      %p250 = scmp.eq.s32.totalorder %s23, 1
      %p251 = por %p249, %p250
      %p252 = scmp.ne.s32.totalorder %s243, %s244
      %p253 = scmp.eq.s32.totalorder %s23, 0
      %p254 = por %p252, %p253
      %p255 = scmp.ne.s32.totalorder %s243, %s244
      %p256 = scmp.eq.s32.totalorder %s24, 1
      %p257 = por %p255, %p256
      %p259 = scmp.ne.s32.totalorder %s244, %s258
      %p260 = scmp.eq.s32.totalorder %s24, 0
      %p261 = por %p259, %p260
      %s262 = ssub.s32 %s18, %s25
      %p263 = scmp.eq.s32.totalorder %s262, 0
      %s265 = sadd.s32 %s264, 1
      %s266 = scalar_select %p263, %s264, %s265
      %p269 = pneg %p263
      %p270 = scmp.eq.s32.totalorder %s18, 1
      %p271 = por %p269, %p270
      %p272 = scmp.ne.s32.totalorder %s264, %s267
      %p273 = scmp.eq.s32.totalorder %s18, 0
      %p274 = por %p272, %p273
      %p275 = scmp.ne.s32.totalorder %s264, %s267
      %p276 = scmp.eq.s32.totalorder %s23, 1
      %p277 = por %p275, %p276
      %p278 = scmp.ne.s32.totalorder %s267, %s268
      %p279 = scmp.eq.s32.totalorder %s23, 0
      %p280 = por %p278, %p279
      %p281 = scmp.ne.s32.totalorder %s267, %s268
      %p282 = scmp.eq.s32.totalorder %s24, 1
      %p283 = por %p281, %p282
      %p285 = scmp.ne.s32.totalorder %s268, %s284
      %p286 = scmp.eq.s32.totalorder %s24, 0
      %p287 = por %p285, %p286
      %p288 = scmp.le.s32.totalorder 1, %s18
      %p289 = scmp.lt.s32.totalorder %s18, 3
      %p290 = pnand %p288, %p289
      %p291 = pneg %p290
      // Predicated region
      $region9: #{multinet_forward.1} parent=5 // pred_check
        _
      $region10: #{multinet_forward.1} parent=5 // pred_check_branch
        %293 = sbr.rel (%p290) target = $region12
      $region11: #{multinet_forward.1} parent=5 // pred_region
        %s294 = ssub.s32 %s18, 1
        // Predicated region
        $region13: #{multinet_forward.1} parent=11 // pred_check
          %p295 = pneg %p65
        $region14: #{multinet_forward.1} parent=11 // pred_check_branch
          %297 = sbr.rel (%p295) target = $region16
        $region15: #{multinet_forward.1} parent=11 // pred_region
          _
        $region16: #{multinet_forward.1} parent=11 // pred_fallthru
          _
        // Predicated region
        $region17: #{multinet_forward.1} parent=11 // pred_check
          %p298 = pneg %p86
        $region18: #{multinet_forward.1} parent=11 // pred_check_branch
          %300 = sbr.rel (%p298) target = $region20
        $region19: #{multinet_forward.1} parent=11 // pred_region
          _
        $region20: #{multinet_forward.1} parent=11 // pred_fallthru
          _
        // Predicated region
        $region21: #{multinet_forward.1} parent=11 // pred_check
          %p301 = pneg %p107
        $region22: #{multinet_forward.1} parent=11 // pred_check_branch
          %303 = sbr.rel (%p301) target = $region24
        $region23: #{multinet_forward.1} parent=11 // pred_region
          %s305 = ssub.s32 8192, 8192
          %306 = vsyncadd [#allocation3], %s305
          %s307 = sshll.u32 [#allocation2], 4
          %s308 = int_to_ptr.vmem [resolvable:$true] %s307
          %313 = dma.hbm_to_vmem [thread:$0]  %s3, 8192, %s308, [#allocation3], 64, 64, 4
        $region24: #{multinet_forward.1} parent=11 // pred_fallthru
          _
        // Predicated region
        $region25: #{multinet_forward.1} parent=11 // pred_check
          %p314 = pneg %p128
        $region26: #{multinet_forward.1} parent=11 // pred_check_branch
          %316 = sbr.rel (%p314) target = $region28
        $region27: #{multinet_forward.1} parent=11 // pred_region
          _
        $region28: #{multinet_forward.1} parent=11 // pred_fallthru
          _
        // Predicated region
        $region29: #{multinet_forward.1} parent=11 // pred_check
          %p317 = pneg %p149
        $region30: #{multinet_forward.1} parent=11 // pred_check_branch
          %319 = sbr.rel (%p317) target = $region32
        $region31: #{multinet_forward.1} parent=11 // pred_region
          _
        $region32: #{multinet_forward.1} parent=11 // pred_fallthru
          _
        // Predicated region
        $region33: #{multinet_forward.1} parent=11 // pred_check
          %p320 = pneg %p170
        $region34: #{multinet_forward.1} parent=11 // pred_check_branch
          %322 = sbr.rel (%p320) target = $region36
        $region35: #{multinet_forward.1} parent=11 // pred_region
          _
        $region36: #{multinet_forward.1} parent=11 // pred_fallthru
          _
        // Predicated region
        $region37: #{multinet_forward.1} parent=11 // pred_check
          %p323 = pneg %p191
        $region38: #{multinet_forward.1} parent=11 // pred_check_branch
          %325 = sbr.rel (%p323) target = $region40
        $region39: #{multinet_forward.1} parent=11 // pred_region
          _
        $region40: #{multinet_forward.1} parent=11 // pred_fallthru
          _
        // Predicated region
        $region41: #{multinet_forward.1} parent=11 // pred_check
          %p326 = pneg %p212
        $region42: #{multinet_forward.1} parent=11 // pred_check_branch
          %328 = sbr.rel (%p326) target = $region44
        $region43: #{multinet_forward.1} parent=11 // pred_region
          _
        $region44: #{multinet_forward.1} parent=11 // pred_fallthru
          _
        // Predicated region
        $region45: #{multinet_forward.1} parent=11 // pred_check
          %p329 = pneg %p233
        $region46: #{multinet_forward.1} parent=11 // pred_check_branch
          %331 = sbr.rel (%p329) target = $region48
        $region47: #{multinet_forward.1} parent=11 // pred_region
          _
        $region48: #{multinet_forward.1} parent=11 // pred_fallthru
          _
        // Predicated region
        $region49: #{multinet_forward.1} parent=11 // pred_check
          %p332 = pneg %p254
        $region50: #{multinet_forward.1} parent=11 // pred_check_branch
          %334 = sbr.rel (%p332) target = $region52
        $region51: #{multinet_forward.1} parent=11 // pred_region
          _
        $region52: #{multinet_forward.1} parent=11 // pred_fallthru
          _
      $region12: #{multinet_forward.1} parent=5 // pred_fallthru
        _
      %p335 = scmp.lt.s32.totalorder %s18, 2
      // Predicated region
      $region53: #{multinet_forward.1} parent=5 // pred_check
        %p336 = pneg %p335
      $region54: #{multinet_forward.1} parent=5 // pred_check_branch
        %338 = sbr.rel (%p336) target = $region56
      $region55: #{multinet_forward.1} parent=5 // pred_region
        // Predicated region
        $region57: #{multinet_forward.1} parent=55 // pred_check
          %p339 = pneg %p38
        $region58: #{multinet_forward.1} parent=55 // pred_check_branch
          %341 = sbr.rel (%p339) target = $region60
        $region59: #{multinet_forward.1} parent=55 // pred_region
          %s342 = smul.u32 4, %s18
          %p343 = scmp.lt.s32.totalorder %s342, 7
          %s344 = scalar_select %p343, %s342, 7
          %s345 = smul.addr %s344, 4
          %s346 = smul.addr %s345, 8
          %s347 = scalar_lea.vmem %s0, %s346
          %s348 = smul.u32 4, %s18
        $region60: #{multinet_forward.1} parent=55 // pred_fallthru
          _
      $region56: #{multinet_forward.1} parent=5 // pred_fallthru
        _
      %p349 = scmp.le.s32.totalorder 1, %s18
      %p350 = scmp.lt.s32.totalorder %s18, 3
      %p351 = pnand %p349, %p350
      %p352 = pneg %p351
      // Predicated region
      $region61: #{multinet_forward.1} parent=5 // pred_check
        _
      $region62: #{multinet_forward.1} parent=5 // pred_check_branch
        %354 = sbr.rel (%p351) target = $region64
      $region63: #{multinet_forward.1} parent=5 // pred_region
        %s355 = ssub.s32 %s18, 1
        // Predicated region
        $region65: #{multinet_forward.1} parent=63 // pred_check
          %p356 = pneg %p107
        $region66: #{multinet_forward.1} parent=63 // pred_check_branch
          %358 = sbr.rel (%p356) target = $region68
        $region67: #{multinet_forward.1} parent=63 // pred_region
          %359 = dma.done [#allocation3], 8192
        $region68: #{multinet_forward.1} parent=63 // pred_fallthru
          _
        %s360 = smul.u32 4, %s23
        %p361 = scmp.lt.s32.totalorder %s360, 7
        %s362 = scalar_select %p361, %s360, 7
        %s363 = smul.addr %s362, 4
        %s364 = smul.addr %s363, 8
        %s365 = scalar_lea.vmem %s0, %s364
        %p366 = pneg %p44
        %p367 = pneg %p41
        %p368 = pneg %p65
        %p369 = pneg %p62
        %p370 = pneg %p86
        %p371 = pneg %p83
        %p372 = pneg %p107
        %p373 = pneg %p104
        %p374 = pneg %p128
        %p375 = pneg %p125
        %p376 = pneg %p149
        %p377 = pneg %p146
        %p378 = pneg %p170
        %p379 = pneg %p167
        %p380 = pneg %p191
        %p381 = pneg %p188
        %p382 = pneg %p212
        %p383 = pneg %p209
        %p384 = pneg %p233
        %p385 = pneg %p230
        %p386 = pneg %p254
        %p387 = pneg %p251
        %p388 = pneg %p280
        %p389 = pneg %p277
        %s390 = smul.u32 4, %s23
        %p391 = scmp.lt.s32.totalorder %s390, 7
        %s392 = scalar_select %p391, %s390, 7
        %s393 = smul.addr %s392, 8
        %s394 = scalar_lea.vmem %s11, %s393
        %s395 = smul.u32 4, %s23
        %p396 = scmp.lt.s32.totalorder %s395, 7
        %s397 = scalar_select %p396, %s395, 7
        %s398 = smul.addr %s397, 4
        %s399 = smul.addr %s398, 8
        %s400 = scalar_lea.vmem %s0, %s399
        %s401 = smul.u32 4, %s23
        %s402 = smul.u32 4, %s23
        %p403 = scmp.lt.s32.totalorder %s402, 7
        %s404 = scalar_select %p403, %s402, 7
        %s405 = smul.addr %s404, 8
        %s406 = scalar_lea.vmem %s11, %s405
        %s407 = smul.u32 4, %s23
        %v409 = vld [vmem:[%s400] sm:$0xff]
        %v410 = vld [vmem:[%s400 + $0x20] sm:$0xff]
        %v411 = vld [vmem:[%s400 + $0x40] sm:$0xff]
        %v412 = vld [vmem:[%s400 + $0x60] sm:$0xff]
        %v413 = vpack.c.bf16 %v410, %v409
        %v414 = vpack.c.bf16 %v412, %v411
        %v415 = vld [vmem:[%s1] sm:$0xff]
        %v416 = vld [vmem:[%s1 + $0x8] sm:$0xff]
        %v417 = vld [vmem:[%s1 + $0x10] sm:$0xff]
        %v418 = vld [vmem:[%s1 + $0x18] sm:$0xff]
        %v419 = vld [vmem:[%s1 + $0x20] sm:$0xff]
        %v420 = vld [vmem:[%s1 + $0x28] sm:$0xff]
        %v421 = vld [vmem:[%s1 + $0x30] sm:$0xff]
        %v422 = vld [vmem:[%s1 + $0x38] sm:$0xff]
        %v423 = vld [vmem:[%s1 + $0x40] sm:$0xff]
        %v424 = vld [vmem:[%s1 + $0x48] sm:$0xff]
        %v425 = vld [vmem:[%s1 + $0x50] sm:$0xff]
        %v426 = vld [vmem:[%s1 + $0x58] sm:$0xff]
        %v427 = vld [vmem:[%s1 + $0x60] sm:$0xff]
        %v428 = vld [vmem:[%s1 + $0x68] sm:$0xff]
        %v429 = vld [vmem:[%s1 + $0x70] sm:$0xff]
        %v430 = vld [vmem:[%s1 + $0x78] sm:$0xff]
        %v431 = vld [vmem:[%s2] sm:$0x3]
        %v433 = vlaneseq
        %v434 = vshrl.u32 %v433, 7
        %v435 = vsub.s32 0, %v434
        %v436 = vrot.slane %v431, %v435
        %v437 = vlaneseq
        %v438 = vshrl.u32 %v437, 7
        %v439 = vsub.s32 1, %v438
        %v440 = vrot.slane %v431, %v439
        %v459 = vunpack.c.l.b16 %v415
        %v460 = vunpack.c.h.b16 %v415
        %v461 = vunpack.c.l.b16 %v416
        %v462 = vunpack.c.h.b16 %v416
        %v463 = vunpack.c.l.b16 %v417
        %v464 = vunpack.c.h.b16 %v417
        %v465 = vunpack.c.l.b16 %v418
        %v466 = vunpack.c.h.b16 %v418
        %v467 = vunpack.c.l.b16 %v419
        %v468 = vunpack.c.h.b16 %v419
        %v469 = vunpack.c.l.b16 %v420
        %v470 = vunpack.c.h.b16 %v420
        %v471 = vunpack.c.l.b16 %v421
        %v472 = vunpack.c.h.b16 %v421
        %v473 = vunpack.c.l.b16 %v422
        %v474 = vunpack.c.h.b16 %v422
        %v475 = vunpack.c.l.b16 %v423
        %v476 = vunpack.c.h.b16 %v423
        %v477 = vunpack.c.l.b16 %v424
        %v478 = vunpack.c.h.b16 %v424
        %v479 = vunpack.c.l.b16 %v425
        %v480 = vunpack.c.h.b16 %v425
        %v481 = vunpack.c.l.b16 %v426
        %v482 = vunpack.c.h.b16 %v426
        %v483 = vunpack.c.l.b16 %v427
        %v484 = vunpack.c.h.b16 %v427
        %v485 = vunpack.c.l.b16 %v428
        %v486 = vunpack.c.h.b16 %v428
        %v487 = vunpack.c.l.b16 %v429
        %v488 = vunpack.c.h.b16 %v429
        %v489 = vunpack.c.l.b16 %v430
        %v490 = vunpack.c.h.b16 %v430
        %v491 = vpack.c.b16 %v461, %v459
        %v492 = vpack.c.b16 %v462, %v460
        %v493 = vpack.c.b16 %v465, %v463
        %v494 = vpack.c.b16 %v466, %v464
        %v495 = vpack.c.b16 %v469, %v467
        %v496 = vpack.c.b16 %v470, %v468
        %v497 = vpack.c.b16 %v473, %v471
        %v498 = vpack.c.b16 %v474, %v472
        %v499 = vpack.c.b16 %v477, %v475
        %v500 = vpack.c.b16 %v478, %v476
        %v501 = vpack.c.b16 %v481, %v479
        %v502 = vpack.c.b16 %v482, %v480
        %v503 = vpack.c.b16 %v485, %v483
        %v504 = vpack.c.b16 %v486, %v484
        %v505 = vpack.c.b16 %v489, %v487
        %v506 = vpack.c.b16 %v490, %v488
        %523 = vmatprep.subr.bf16.mxu0 %v492
        %524 = vmatpush1.bf16.msra.mxu0 %v491
        %525 = vmatprep.subr.bf16.mxu0 %v494
        %526 = vmatpush1.bf16.msra.mxu0 %v493
        %527 = vmatprep.subr.bf16.mxu0 %v496
        %528 = vmatpush1.bf16.msra.mxu0 %v495
        %529 = vmatprep.subr.bf16.mxu0 %v498
        %530 = vmatpush1.bf16.msra.mxu0 %v497
        %531 = vmatprep.subr.bf16.mxu0 %v500
        %532 = vmatpush1.bf16.msra.mxu0 %v499
        %533 = vmatprep.subr.bf16.mxu0 %v502
        %534 = vmatpush1.bf16.msra.mxu0 %v501
        %535 = vmatprep.subr.bf16.mxu0 %v504
        %536 = vmatpush1.bf16.msra.mxu0 %v503
        %537 = vmatprep.subr.bf16.mxu0 %v506
        %538 = vmatpush1.bf16.msra.mxu0 %v505
        %539 = vmatprep.subr.bf16.mxu0 0
        %540 = vmatpush1.bf16.msra.mxu0 0
        %541 = vmatprep.subr.bf16.mxu0 0
        %542 = vmatpush1.bf16.msra.mxu0 0
        %543 = vmatprep.subr.bf16.mxu0 0
        %544 = vmatpush1.bf16.msra.mxu0 0
        %545 = vmatprep.subr.bf16.mxu0 0
        %546 = vmatpush1.bf16.msra.mxu0 0
        %547 = vmatprep.subr.bf16.mxu0 0
        %548 = vmatpush1.bf16.msra.mxu0 0
        %549 = vmatprep.subr.bf16.mxu0 0
        %550 = vmatpush1.bf16.msra.mxu0 0
        %551 = vmatprep.subr.bf16.mxu0 0
        %552 = vmatpush1.bf16.msra.mxu0 0
        %553 = vmatprep.subr.bf16.mxu0 0
        %554 = vmatpush1.bf16.msra.mxu0 0
        %555 = vmatprep.mubr.bf16.mxu0 0
        %556 = vmatmul.mubr.bf16.gmra.mrb[0].mxu0 %v413
        %v557 = vpop.f32.mrb[0].mxu0
        %v558 = vadd.f32 %v436, %v557
        %v559 = vpop.f32.mrb[0].mxu0
        %v560 = vadd.f32 %v440, %v559
        %v561 = vpop.f32.mrb[0].mxu0
        %v562 = vadd.f32 %v436, %v561
        %v563 = vpop.f32.mrb[0].mxu0
        %v564 = vadd.f32 %v440, %v563
        %565 = vmatprep.mubr.bf16.mxu0 0
        %566 = vmatmul.mubr.bf16.gmra.mrb[0].mxu0 %v414
        %v567 = vpop.f32.mrb[0].mxu0
        %v568 = vadd.f32 %v436, %v567
        %v569 = vpop.f32.mrb[0].mxu0
        %v570 = vadd.f32 %v440, %v569
        %v571 = vpop.f32.mrb[0].mxu0
        %v572 = vadd.f32 %v436, %v571
        %v573 = vpop.f32.mrb[0].mxu0
        %v574 = vadd.f32 %v440, %v573
        %575 = vdwg.mxu0
        %v576 = vmax.f32 %v558, 0.0
        %v577 = vmax.f32 %v560, 0.0
        %v578 = vmax.f32 %v562, 0.0
        %v579 = vmax.f32 %v564, 0.0
        %v580 = vmax.f32 %v568, 0.0
        %v581 = vmax.f32 %v570, 0.0
        %v582 = vmax.f32 %v572, 0.0
        %v583 = vmax.f32 %v574, 0.0
        %v584 = vpack.c.bf16 %v578, %v576
        %v585 = vpack.c.bf16 %v579, %v577
        %v586 = vpack.c.bf16 %v582, %v580
        %v587 = vpack.c.bf16 %v583, %v581
        %v588 = vld [vmem:[#allocation2] sm:$0xf]
        %v589 = vld [vmem:[#allocation2 + $0x4] sm:$0xf]
        %v590 = vld [vmem:[#allocation2 + $0x8] sm:$0xf]
        %v591 = vld [vmem:[#allocation2 + $0xc] sm:$0xf]
        %v592 = vld [vmem:[#allocation2 + $0x10] sm:$0xf]
        %v593 = vld [vmem:[#allocation2 + $0x14] sm:$0xf]
        %v594 = vld [vmem:[#allocation2 + $0x18] sm:$0xf]
        %v595 = vld [vmem:[#allocation2 + $0x1c] sm:$0xf]
        %v596 = vld [vmem:[#allocation2 + $0x20] sm:$0xf]
        %v597 = vld [vmem:[#allocation2 + $0x24] sm:$0xf]
        %v598 = vld [vmem:[#allocation2 + $0x28] sm:$0xf]
        %v599 = vld [vmem:[#allocation2 + $0x2c] sm:$0xf]
        %v600 = vld [vmem:[#allocation2 + $0x30] sm:$0xf]
        %v601 = vld [vmem:[#allocation2 + $0x34] sm:$0xf]
        %v602 = vld [vmem:[#allocation2 + $0x38] sm:$0xf]
        %v603 = vld [vmem:[#allocation2 + $0x3c] sm:$0xf]
        %v604 = vld [vmem:[#allocation2 + $0x40] sm:$0xf]
        %v605 = vld [vmem:[#allocation2 + $0x44] sm:$0xf]
        %v606 = vld [vmem:[#allocation2 + $0x48] sm:$0xf]
        %v607 = vld [vmem:[#allocation2 + $0x4c] sm:$0xf]
        %v608 = vld [vmem:[#allocation2 + $0x50] sm:$0xf]
        %v609 = vld [vmem:[#allocation2 + $0x54] sm:$0xf]
        %v610 = vld [vmem:[#allocation2 + $0x58] sm:$0xf]
        %v611 = vld [vmem:[#allocation2 + $0x5c] sm:$0xf]
        %v612 = vld [vmem:[#allocation2 + $0x60] sm:$0xf]
        %v613 = vld [vmem:[#allocation2 + $0x64] sm:$0xf]
        %v614 = vld [vmem:[#allocation2 + $0x68] sm:$0xf]
        %v615 = vld [vmem:[#allocation2 + $0x6c] sm:$0xf]
        %v616 = vld [vmem:[#allocation2 + $0x70] sm:$0xf]
        %v617 = vld [vmem:[#allocation2 + $0x74] sm:$0xf]
        %v618 = vld [vmem:[#allocation2 + $0x78] sm:$0xf]
        %v619 = vld [vmem:[#allocation2 + $0x7c] sm:$0xf]
        %v620 = vld [vmem:[%s4] sm:$0x1]
        %v622 = vlaneseq
        %v623 = vshrl.u32 %v622, 7
        %v624 = vsub.s32 0, %v623
        %v625 = vrot.slane %v620, %v624
        %v659 = vunpack.c.l.b16 %v588
        %v660 = vunpack.c.l.b16 %v589
        %v661 = vunpack.c.l.b16 %v590
        %v662 = vunpack.c.l.b16 %v591
        %v663 = vunpack.c.l.b16 %v592
        %v664 = vunpack.c.l.b16 %v593
        %v665 = vunpack.c.l.b16 %v594
        %v666 = vunpack.c.l.b16 %v595
        %v667 = vunpack.c.l.b16 %v596
        %v668 = vunpack.c.l.b16 %v597
        %v669 = vunpack.c.l.b16 %v598
        %v670 = vunpack.c.l.b16 %v599
        %v671 = vunpack.c.l.b16 %v600
        %v672 = vunpack.c.l.b16 %v601
        %v673 = vunpack.c.l.b16 %v602
        %v674 = vunpack.c.l.b16 %v603
        %v675 = vunpack.c.l.b16 %v604
        %v676 = vunpack.c.l.b16 %v605
        %v677 = vunpack.c.l.b16 %v606
        %v678 = vunpack.c.l.b16 %v607
        %v679 = vunpack.c.l.b16 %v608
        %v680 = vunpack.c.l.b16 %v609
        %v681 = vunpack.c.l.b16 %v610
        %v682 = vunpack.c.l.b16 %v611
        %v683 = vunpack.c.l.b16 %v612
        %v684 = vunpack.c.l.b16 %v613
        %v685 = vunpack.c.l.b16 %v614
        %v686 = vunpack.c.l.b16 %v615
        %v687 = vunpack.c.l.b16 %v616
        %v688 = vunpack.c.l.b16 %v617
        %v689 = vunpack.c.l.b16 %v618
        %v690 = vunpack.c.l.b16 %v619
        %v691 = vpack.c.b16 %v660, %v659
        %v692 = vpack.c.b16 %v662, %v661
        %v693 = vpack.c.b16 %v664, %v663
        %v694 = vpack.c.b16 %v666, %v665
        %v695 = vpack.c.b16 %v668, %v667
        %v696 = vpack.c.b16 %v670, %v669
        %v697 = vpack.c.b16 %v672, %v671
        %v698 = vpack.c.b16 %v674, %v673
        %v699 = vpack.c.b16 %v676, %v675
        %v700 = vpack.c.b16 %v678, %v677
        %v701 = vpack.c.b16 %v680, %v679
        %v702 = vpack.c.b16 %v682, %v681
        %v703 = vpack.c.b16 %v684, %v683
        %v704 = vpack.c.b16 %v686, %v685
        %v705 = vpack.c.b16 %v688, %v687
        %v706 = vpack.c.b16 %v690, %v689
        %723 = vmatprep.subr.bf16.mxu0 0
        %724 = vmatpush1.bf16.msra.mxu0 %v691
        %725 = vmatprep.subr.bf16.mxu0 0
        %726 = vmatpush1.bf16.msra.mxu0 %v692
        %727 = vmatprep.subr.bf16.mxu0 0
        %728 = vmatpush1.bf16.msra.mxu0 %v693
        %729 = vmatprep.subr.bf16.mxu0 0
        %730 = vmatpush1.bf16.msra.mxu0 %v694
        %731 = vmatprep.subr.bf16.mxu0 0
        %732 = vmatpush1.bf16.msra.mxu0 %v695
        %733 = vmatprep.subr.bf16.mxu0 0
        %734 = vmatpush1.bf16.msra.mxu0 %v696
        %735 = vmatprep.subr.bf16.mxu0 0
        %736 = vmatpush1.bf16.msra.mxu0 %v697
        %737 = vmatprep.subr.bf16.mxu0 0
        %738 = vmatpush1.bf16.msra.mxu0 %v698
        %739 = vmatprep.subr.bf16.mxu0 0
        %740 = vmatpush1.bf16.msra.mxu0 %v699
        %741 = vmatprep.subr.bf16.mxu0 0
        %742 = vmatpush1.bf16.msra.mxu0 %v700
        %743 = vmatprep.subr.bf16.mxu0 0
        %744 = vmatpush1.bf16.msra.mxu0 %v701
        %745 = vmatprep.subr.bf16.mxu0 0
        %746 = vmatpush1.bf16.msra.mxu0 %v702
        %747 = vmatprep.subr.bf16.mxu0 0
        %748 = vmatpush1.bf16.msra.mxu0 %v703
        %749 = vmatprep.subr.bf16.mxu0 0
        %750 = vmatpush1.bf16.msra.mxu0 %v704
        %751 = vmatprep.subr.bf16.mxu0 0
        %752 = vmatpush1.bf16.msra.mxu0 %v705
        %753 = vmatprep.subr.bf16.mxu0 0
        %754 = vmatpush1.bf16.msra.mxu0 %v706
        %755 = vmatprep.mubr.bf16.mxu0 %v585
        %756 = vmatmul.mubr.bf16.gmra.mrb[0].mxu0 %v584
        %v757 = vpop.f32.mrb[0].mxu0
        %v758 = vadd.f32 %v625, %v757
        %v759 = vpop.f32.mrb[0].mxu0
        %v760 = vpop.f32.mrb[0].mxu0
        %v761 = vadd.f32 %v625, %v760
        %v762 = vpop.f32.mrb[0].mxu0
        %763 = vmatprep.mubr.bf16.mxu0 %v587
        %764 = vmatmul.mubr.bf16.gmra.mrb[0].mxu0 %v586
        %v765 = vpop.f32.mrb[0].mxu0
        %v766 = vadd.f32 %v625, %v765
        %v767 = vpop.f32.mrb[0].mxu0
        %v768 = vpop.f32.mrb[0].mxu0
        %v769 = vadd.f32 %v625, %v768
        %v770 = vpop.f32.mrb[0].mxu0
        %771 = vdwg.mxu0
        %v772 = vmax.f32 %v758, 0.0
        %v773 = vmax.f32 %v761, 0.0
        %v774 = vmax.f32 %v766, 0.0
        %v775 = vmax.f32 %v769, 0.0
        %v776 = vpack.c.bf16 %v773, %v772
        %v777 = vpack.c.bf16 %v775, %v774
        %v778 = vld [vmem:[%s5] sm:$0xf]
        %v779 = vld [vmem:[%s5 + $0x4] sm:$0xf]
        %v780 = vld [vmem:[%s5 + $0x8] sm:$0xf]
        %v781 = vld [vmem:[%s5 + $0xc] sm:$0xf]
        %v782 = vld [vmem:[%s5 + $0x10] sm:$0xf]
        %v783 = vld [vmem:[%s5 + $0x14] sm:$0xf]
        %v784 = vld [vmem:[%s5 + $0x18] sm:$0xf]
        %v785 = vld [vmem:[%s5 + $0x1c] sm:$0xf]
        %v786 = vld [vmem:[%s5 + $0x20] sm:$0xf]
        %v787 = vld [vmem:[%s5 + $0x24] sm:$0xf]
        %v788 = vld [vmem:[%s5 + $0x28] sm:$0xf]
        %v789 = vld [vmem:[%s5 + $0x2c] sm:$0xf]
        %v790 = vld [vmem:[%s5 + $0x30] sm:$0xf]
        %v791 = vld [vmem:[%s5 + $0x34] sm:$0xf]
        %v792 = vld [vmem:[%s5 + $0x38] sm:$0xf]
        %v793 = vld [vmem:[%s5 + $0x3c] sm:$0xf]
        %v794 = vld [vmem:[%s6] sm:$0x1]
        %v796 = vlaneseq
        %v797 = vshrl.u32 %v796, 7
        %v798 = vsub.s32 0, %v797
        %v799 = vrot.slane %v794, %v798
        %v817 = vunpack.c.l.b16 %v778
        %v818 = vunpack.c.l.b16 %v779
        %v819 = vunpack.c.l.b16 %v780
        %v820 = vunpack.c.l.b16 %v781
        %v821 = vunpack.c.l.b16 %v782
        %v822 = vunpack.c.l.b16 %v783
        %v823 = vunpack.c.l.b16 %v784
        %v824 = vunpack.c.l.b16 %v785
        %v825 = vunpack.c.l.b16 %v786
        %v826 = vunpack.c.l.b16 %v787
        %v827 = vunpack.c.l.b16 %v788
        %v828 = vunpack.c.l.b16 %v789
        %v829 = vunpack.c.l.b16 %v790
        %v830 = vunpack.c.l.b16 %v791
        %v831 = vunpack.c.l.b16 %v792
        %v832 = vunpack.c.l.b16 %v793
        %v833 = vpack.c.b16 %v818, %v817
        %v834 = vpack.c.b16 %v820, %v819
        %v835 = vpack.c.b16 %v822, %v821
        %v836 = vpack.c.b16 %v824, %v823
        %v837 = vpack.c.b16 %v826, %v825
        %v838 = vpack.c.b16 %v828, %v827
        %v839 = vpack.c.b16 %v830, %v829
        %v840 = vpack.c.b16 %v832, %v831
        %849 = vmatprep.subr.bf16.mxu0 0
        %850 = vmatpush1.bf16.msra.mxu0 %v833
        %851 = vmatprep.subr.bf16.mxu0 0
        %852 = vmatpush1.bf16.msra.mxu0 %v834
        %853 = vmatprep.subr.bf16.mxu0 0
        %854 = vmatpush1.bf16.msra.mxu0 %v835
        %855 = vmatprep.subr.bf16.mxu0 0
        %856 = vmatpush1.bf16.msra.mxu0 %v836
        %857 = vmatprep.subr.bf16.mxu0 0
        %858 = vmatpush1.bf16.msra.mxu0 %v837
        %859 = vmatprep.subr.bf16.mxu0 0
        %860 = vmatpush1.bf16.msra.mxu0 %v838
        %861 = vmatprep.subr.bf16.mxu0 0
        %862 = vmatpush1.bf16.msra.mxu0 %v839
        %863 = vmatprep.subr.bf16.mxu0 0
        %864 = vmatpush1.bf16.msra.mxu0 %v840
        %865 = vmatprep.subr.bf16.mxu0 0
        %866 = vmatpush1.bf16.msra.mxu0 0
        %867 = vmatprep.subr.bf16.mxu0 0
        %868 = vmatpush1.bf16.msra.mxu0 0
        %869 = vmatprep.subr.bf16.mxu0 0
        %870 = vmatpush1.bf16.msra.mxu0 0
        %871 = vmatprep.subr.bf16.mxu0 0
        %872 = vmatpush1.bf16.msra.mxu0 0
        %873 = vmatprep.subr.bf16.mxu0 0
        %874 = vmatpush1.bf16.msra.mxu0 0
        %875 = vmatprep.subr.bf16.mxu0 0
        %876 = vmatpush1.bf16.msra.mxu0 0
        %877 = vmatprep.subr.bf16.mxu0 0
        %878 = vmatpush1.bf16.msra.mxu0 0
        %879 = vmatprep.subr.bf16.mxu0 0
        %880 = vmatpush1.bf16.msra.mxu0 0
        %881 = vmatprep.mubr.bf16.mxu0 0
        %882 = vmatmul.mubr.bf16.gmra.mrb[0].mxu0 %v776
        %v883 = vpop.f32.mrb[0].mxu0
        %v884 = vadd.f32 %v799, %v883
        %v885 = vpop.f32.mrb[0].mxu0
        %v886 = vpop.f32.mrb[0].mxu0
        %v887 = vadd.f32 %v799, %v886
        %v888 = vpop.f32.mrb[0].mxu0
        %889 = vmatprep.mubr.bf16.mxu0 0
        %890 = vmatmul.mubr.bf16.gmra.mrb[0].mxu0 %v777
        %v891 = vpop.f32.mrb[0].mxu0
        %v892 = vadd.f32 %v799, %v891
        %v893 = vpop.f32.mrb[0].mxu0
        %v894 = vpop.f32.mrb[0].mxu0
        %v895 = vadd.f32 %v799, %v894
        %v896 = vpop.f32.mrb[0].mxu0
        %897 = vdwg.mxu0
        %v898 = vmax.f32 %v884, 0.0
        %v899 = vmax.f32 %v887, 0.0
        %v900 = vmax.f32 %v892, 0.0
        %v901 = vmax.f32 %v895, 0.0
        %v902 = vpack.c.bf16 %v899, %v898
        %v903 = vpack.c.bf16 %v901, %v900
        %v904 = vld [vmem:[%s7] sm:$0xf]
        %v905 = vld [vmem:[%s7 + $0x4] sm:$0xf]
        %v906 = vld [vmem:[%s7 + $0x8] sm:$0xf]
        %v907 = vld [vmem:[%s7 + $0xc] sm:$0xf]
        %v908 = vld [vmem:[%s7 + $0x10] sm:$0xf]
        %v909 = vld [vmem:[%s7 + $0x14] sm:$0xf]
        %v910 = vld [vmem:[%s7 + $0x18] sm:$0xf]
        %v911 = vld [vmem:[%s7 + $0x1c] sm:$0xf]
        %v912 = vld [vmem:[%s400 + $0x8] sm:$0xff]
        %v913 = vld [vmem:[%s400 + $0x28] sm:$0xff]
        %v914 = vld [vmem:[%s400 + $0x48] sm:$0xff]
        %v915 = vld [vmem:[%s400 + $0x68] sm:$0xff]
        %v916 = vpack.c.bf16 %v913, %v912
        %v917 = vpack.c.bf16 %v915, %v914
        %s918 = scalar_lea.vmem %s1, 128
        %v919 = vld [vmem:[%s918] sm:$0xff]
        %v920 = vld [vmem:[%s918 + $0x8] sm:$0xff]
        %v921 = vld [vmem:[%s918 + $0x10] sm:$0xff]
        %v922 = vld [vmem:[%s918 + $0x18] sm:$0xff]
        %v923 = vld [vmem:[%s918 + $0x20] sm:$0xff]
        %v924 = vld [vmem:[%s918 + $0x28] sm:$0xff]
        %v925 = vld [vmem:[%s918 + $0x30] sm:$0xff]
        %v926 = vld [vmem:[%s918 + $0x38] sm:$0xff]
        %v927 = vld [vmem:[%s918 + $0x40] sm:$0xff]
        %v928 = vld [vmem:[%s918 + $0x48] sm:$0xff]
        %v929 = vld [vmem:[%s918 + $0x50] sm:$0xff]
        %v930 = vld [vmem:[%s918 + $0x58] sm:$0xff]
        %v931 = vld [vmem:[%s918 + $0x60] sm:$0xff]
        %v932 = vld [vmem:[%s918 + $0x68] sm:$0xff]
        %v933 = vld [vmem:[%s918 + $0x70] sm:$0xff]
        %v934 = vld [vmem:[%s918 + $0x78] sm:$0xff]
        %s935 = scalar_lea.vmem %s2, 2
        %v936 = vld [vmem:[%s935] sm:$0x3]
        %v938 = vlaneseq
        %v939 = vshrl.u32 %v938, 7
        %v940 = vsub.s32 0, %v939
        %v941 = vrot.slane %v936, %v940
        %v942 = vlaneseq
        %v943 = vshrl.u32 %v942, 7
        %v944 = vsub.s32 1, %v943
        %v945 = vrot.slane %v936, %v944
        %v964 = vunpack.c.l.b16 %v919
        %v965 = vunpack.c.h.b16 %v919
        %v966 = vunpack.c.l.b16 %v920
        %v967 = vunpack.c.h.b16 %v920
        %v968 = vunpack.c.l.b16 %v921
        %v969 = vunpack.c.h.b16 %v921
        %v970 = vunpack.c.l.b16 %v922
        %v971 = vunpack.c.h.b16 %v922
        %v972 = vunpack.c.l.b16 %v923
        %v973 = vunpack.c.h.b16 %v923
        %v974 = vunpack.c.l.b16 %v924
        %v975 = vunpack.c.h.b16 %v924
        %v976 = vunpack.c.l.b16 %v925
        %v977 = vunpack.c.h.b16 %v925
        %v978 = vunpack.c.l.b16 %v926
        %v979 = vunpack.c.h.b16 %v926
        %v980 = vunpack.c.l.b16 %v927
        %v981 = vunpack.c.h.b16 %v927
        %v982 = vunpack.c.l.b16 %v928
        %v983 = vunpack.c.h.b16 %v928
        %v984 = vunpack.c.l.b16 %v929
        %v985 = vunpack.c.h.b16 %v929
        %v986 = vunpack.c.l.b16 %v930
        %v987 = vunpack.c.h.b16 %v930
        %v988 = vunpack.c.l.b16 %v931
        %v989 = vunpack.c.h.b16 %v931
        %v990 = vunpack.c.l.b16 %v932
        %v991 = vunpack.c.h.b16 %v932
        %v992 = vunpack.c.l.b16 %v933
        %v993 = vunpack.c.h.b16 %v933
        %v994 = vunpack.c.l.b16 %v934
        %v995 = vunpack.c.h.b16 %v934
        %v996 = vpack.c.b16 %v966, %v964
        %v997 = vpack.c.b16 %v967, %v965
        %v998 = vpack.c.b16 %v970, %v968
        %v999 = vpack.c.b16 %v971, %v969
        %v1000 = vpack.c.b16 %v974, %v972
        %v1001 = vpack.c.b16 %v975, %v973
        %v1002 = vpack.c.b16 %v978, %v976
        %v1003 = vpack.c.b16 %v979, %v977
        %v1004 = vpack.c.b16 %v982, %v980
        %v1005 = vpack.c.b16 %v983, %v981
        %v1006 = vpack.c.b16 %v986, %v984
        %v1007 = vpack.c.b16 %v987, %v985
        %v1008 = vpack.c.b16 %v990, %v988
        %v1009 = vpack.c.b16 %v991, %v989
        %v1010 = vpack.c.b16 %v994, %v992
        %v1011 = vpack.c.b16 %v995, %v993
        %1028 = vmatprep.subr.bf16.mxu0 %v997
        %1029 = vmatpush1.bf16.msra.mxu0 %v996
        %1030 = vmatprep.subr.bf16.mxu0 %v999
        %1031 = vmatpush1.bf16.msra.mxu0 %v998
        %1032 = vmatprep.subr.bf16.mxu0 %v1001
        %1033 = vmatpush1.bf16.msra.mxu0 %v1000
        %1034 = vmatprep.subr.bf16.mxu0 %v1003
        %1035 = vmatpush1.bf16.msra.mxu0 %v1002
        %1036 = vmatprep.subr.bf16.mxu0 %v1005
        %1037 = vmatpush1.bf16.msra.mxu0 %v1004
        %1038 = vmatprep.subr.bf16.mxu0 %v1007
        %1039 = vmatpush1.bf16.msra.mxu0 %v1006
        %1040 = vmatprep.subr.bf16.mxu0 %v1009
        %1041 = vmatpush1.bf16.msra.mxu0 %v1008
        %1042 = vmatprep.subr.bf16.mxu0 %v1011
        %1043 = vmatpush1.bf16.msra.mxu0 %v1010
        %1044 = vmatprep.subr.bf16.mxu0 0
        %1045 = vmatpush1.bf16.msra.mxu0 0
        %1046 = vmatprep.subr.bf16.mxu0 0
        %1047 = vmatpush1.bf16.msra.mxu0 0
        %1048 = vmatprep.subr.bf16.mxu0 0
        %1049 = vmatpush1.bf16.msra.mxu0 0
        %1050 = vmatprep.subr.bf16.mxu0 0
        %1051 = vmatpush1.bf16.msra.mxu0 0
        %1052 = vmatprep.subr.bf16.mxu0 0
        %1053 = vmatpush1.bf16.msra.mxu0 0
        %1054 = vmatprep.subr.bf16.mxu0 0
        %1055 = vmatpush1.bf16.msra.mxu0 0
        %1056 = vmatprep.subr.bf16.mxu0 0
        %1057 = vmatpush1.bf16.msra.mxu0 0
        %1058 = vmatprep.subr.bf16.mxu0 0
        %1059 = vmatpush1.bf16.msra.mxu0 0
        %1060 = vmatprep.mubr.bf16.mxu0 0
        %1061 = vmatmul.mubr.bf16.gmra.mrb[0].mxu0 %v916
        %v1062 = vpop.f32.mrb[0].mxu0
        %v1063 = vadd.f32 %v941, %v1062
        %v1064 = vpop.f32.mrb[0].mxu0
        %v1065 = vadd.f32 %v945, %v1064
        %v1066 = vpop.f32.mrb[0].mxu0
        %v1067 = vadd.f32 %v941, %v1066
        %v1068 = vpop.f32.mrb[0].mxu0
        %v1069 = vadd.f32 %v945, %v1068
        %1070 = vmatprep.mubr.bf16.mxu0 0
        %1071 = vmatmul.mubr.bf16.gmra.mrb[0].mxu0 %v917
        %v1072 = vpop.f32.mrb[0].mxu0
        %v1073 = vadd.f32 %v941, %v1072
        %v1074 = vpop.f32.mrb[0].mxu0
        %v1075 = vadd.f32 %v945, %v1074
        %v1076 = vpop.f32.mrb[0].mxu0
        %v1077 = vadd.f32 %v941, %v1076
        %v1078 = vpop.f32.mrb[0].mxu0
        %v1079 = vadd.f32 %v945, %v1078
        %1080 = vdwg.mxu0
        %v1081 = vmax.f32 %v1063, 0.0
        %v1082 = vmax.f32 %v1065, 0.0
        %v1083 = vmax.f32 %v1067, 0.0
        %v1084 = vmax.f32 %v1069, 0.0
        %v1085 = vmax.f32 %v1073, 0.0
        %v1086 = vmax.f32 %v1075, 0.0
        %v1087 = vmax.f32 %v1077, 0.0
        %v1088 = vmax.f32 %v1079, 0.0
        %v1089 = vpack.c.bf16 %v1083, %v1081
        %v1090 = vpack.c.bf16 %v1084, %v1082
        %v1091 = vpack.c.bf16 %v1087, %v1085
        %v1092 = vpack.c.bf16 %v1088, %v1086
        %s1093 = scalar_lea.vmem [#allocation2], 128
        %v1094 = vld [vmem:[%s1093] sm:$0xf]
        %v1095 = vld [vmem:[%s1093 + $0x4] sm:$0xf]
        %v1096 = vld [vmem:[%s1093 + $0x8] sm:$0xf]
        %v1097 = vld [vmem:[%s1093 + $0xc] sm:$0xf]
        %v1098 = vld [vmem:[%s1093 + $0x10] sm:$0xf]
        %v1099 = vld [vmem:[%s1093 + $0x14] sm:$0xf]
        %v1100 = vld [vmem:[%s1093 + $0x18] sm:$0xf]
        %v1101 = vld [vmem:[%s1093 + $0x1c] sm:$0xf]
        %v1102 = vld [vmem:[%s1093 + $0x20] sm:$0xf]
        %v1103 = vld [vmem:[%s1093 + $0x24] sm:$0xf]
        %v1104 = vld [vmem:[%s1093 + $0x28] sm:$0xf]
        %v1105 = vld [vmem:[%s1093 + $0x2c] sm:$0xf]
        %v1106 = vld [vmem:[%s1093 + $0x30] sm:$0xf]
        %v1107 = vld [vmem:[%s1093 + $0x34] sm:$0xf]
        %v1108 = vld [vmem:[%s1093 + $0x38] sm:$0xf]
        %v1109 = vld [vmem:[%s1093 + $0x3c] sm:$0xf]
        %v1110 = vld [vmem:[%s1093 + $0x40] sm:$0xf]
        %v1111 = vld [vmem:[%s1093 + $0x44] sm:$0xf]
        %v1112 = vld [vmem:[%s1093 + $0x48] sm:$0xf]
        %v1113 = vld [vmem:[%s1093 + $0x4c] sm:$0xf]
        %v1114 = vld [vmem:[%s1093 + $0x50] sm:$0xf]
        %v1115 = vld [vmem:[%s1093 + $0x54] sm:$0xf]
        %v1116 = vld [vmem:[%s1093 + $0x58] sm:$0xf]
        %v1117 = vld [vmem:[%s1093 + $0x5c] sm:$0xf]
        %v1118 = vld [vmem:[%s1093 + $0x60] sm:$0xf]
        %v1119 = vld [vmem:[%s1093 + $0x64] sm:$0xf]
        %v1120 = vld [vmem:[%s1093 + $0x68] sm:$0xf]
        %v1121 = vld [vmem:[%s1093 + $0x6c] sm:$0xf]
        %v1122 = vld [vmem:[%s1093 + $0x70] sm:$0xf]
        %v1123 = vld [vmem:[%s1093 + $0x74] sm:$0xf]
        %v1124 = vld [vmem:[%s1093 + $0x78] sm:$0xf]
        %v1125 = vld [vmem:[%s1093 + $0x7c] sm:$0xf]
        %s1126 = scalar_lea.vmem %s4, 1
        %v1127 = vld [vmem:[%s1126] sm:$0x1]
        %v1129 = vlaneseq
        %v1130 = vshrl.u32 %v1129, 7
        %v1131 = vsub.s32 0, %v1130
        %v1132 = vrot.slane %v1127, %v1131
        %v1166 = vunpack.c.l.b16 %v1094
        %v1167 = vunpack.c.l.b16 %v1095
        %v1168 = vunpack.c.l.b16 %v1096
        %v1169 = vunpack.c.l.b16 %v1097
        %v1170 = vunpack.c.l.b16 %v1098
        %v1171 = vunpack.c.l.b16 %v1099
        %v1172 = vunpack.c.l.b16 %v1100
        %v1173 = vunpack.c.l.b16 %v1101
        %v1174 = vunpack.c.l.b16 %v1102
        %v1175 = vunpack.c.l.b16 %v1103
        %v1176 = vunpack.c.l.b16 %v1104
        %v1177 = vunpack.c.l.b16 %v1105
        %v1178 = vunpack.c.l.b16 %v1106
        %v1179 = vunpack.c.l.b16 %v1107
        %v1180 = vunpack.c.l.b16 %v1108
        %v1181 = vunpack.c.l.b16 %v1109
        %v1182 = vunpack.c.l.b16 %v1110
        %v1183 = vunpack.c.l.b16 %v1111
        %v1184 = vunpack.c.l.b16 %v1112
        %v1185 = vunpack.c.l.b16 %v1113
        %v1186 = vunpack.c.l.b16 %v1114
        %v1187 = vunpack.c.l.b16 %v1115
        %v1188 = vunpack.c.l.b16 %v1116
        %v1189 = vunpack.c.l.b16 %v1117
        %v1190 = vunpack.c.l.b16 %v1118
        %v1191 = vunpack.c.l.b16 %v1119
        %v1192 = vunpack.c.l.b16 %v1120
        %v1193 = vunpack.c.l.b16 %v1121
        %v1194 = vunpack.c.l.b16 %v1122
        %v1195 = vunpack.c.l.b16 %v1123
        %v1196 = vunpack.c.l.b16 %v1124
        %v1197 = vunpack.c.l.b16 %v1125
        %v1198 = vpack.c.b16 %v1167, %v1166
        %v1199 = vpack.c.b16 %v1169, %v1168
        %v1200 = vpack.c.b16 %v1171, %v1170
        %v1201 = vpack.c.b16 %v1173, %v1172
        %v1202 = vpack.c.b16 %v1175, %v1174
        %v1203 = vpack.c.b16 %v1177, %v1176
        %v1204 = vpack.c.b16 %v1179, %v1178
        %v1205 = vpack.c.b16 %v1181, %v1180
        %v1206 = vpack.c.b16 %v1183, %v1182
        %v1207 = vpack.c.b16 %v1185, %v1184
        %v1208 = vpack.c.b16 %v1187, %v1186
        %v1209 = vpack.c.b16 %v1189, %v1188
        %v1210 = vpack.c.b16 %v1191, %v1190
        %v1211 = vpack.c.b16 %v1193, %v1192
        %v1212 = vpack.c.b16 %v1195, %v1194
        %v1213 = vpack.c.b16 %v1197, %v1196
        %1230 = vmatprep.subr.bf16.mxu0 0
        %1231 = vmatpush1.bf16.msra.mxu0 %v1198
        %1232 = vmatprep.subr.bf16.mxu0 0
        %1233 = vmatpush1.bf16.msra.mxu0 %v1199
        %1234 = vmatprep.subr.bf16.mxu0 0
        %1235 = vmatpush1.bf16.msra.mxu0 %v1200
        %1236 = vmatprep.subr.bf16.mxu0 0
        %1237 = vmatpush1.bf16.msra.mxu0 %v1201
        %1238 = vmatprep.subr.bf16.mxu0 0
        %1239 = vmatpush1.bf16.msra.mxu0 %v1202
        %1240 = vmatprep.subr.bf16.mxu0 0
        %1241 = vmatpush1.bf16.msra.mxu0 %v1203
        %1242 = vmatprep.subr.bf16.mxu0 0
        %1243 = vmatpush1.bf16.msra.mxu0 %v1204
        %1244 = vmatprep.subr.bf16.mxu0 0
        %1245 = vmatpush1.bf16.msra.mxu0 %v1205
        %1246 = vmatprep.subr.bf16.mxu0 0
        %1247 = vmatpush1.bf16.msra.mxu0 %v1206
        %1248 = vmatprep.subr.bf16.mxu0 0
        %1249 = vmatpush1.bf16.msra.mxu0 %v1207
        %1250 = vmatprep.subr.bf16.mxu0 0
        %1251 = vmatpush1.bf16.msra.mxu0 %v1208
        %1252 = vmatprep.subr.bf16.mxu0 0
        %1253 = vmatpush1.bf16.msra.mxu0 %v1209
        %1254 = vmatprep.subr.bf16.mxu0 0
        %1255 = vmatpush1.bf16.msra.mxu0 %v1210
        %1256 = vmatprep.subr.bf16.mxu0 0
        %1257 = vmatpush1.bf16.msra.mxu0 %v1211
        %1258 = vmatprep.subr.bf16.mxu0 0
        %1259 = vmatpush1.bf16.msra.mxu0 %v1212
        %1260 = vmatprep.subr.bf16.mxu0 0
        %1261 = vmatpush1.bf16.msra.mxu0 %v1213
        %1262 = vmatprep.mubr.bf16.mxu0 %v1090
        %1263 = vmatmul.mubr.bf16.gmra.mrb[0].mxu0 %v1089
        %v1264 = vpop.f32.mrb[0].mxu0
        %v1265 = vadd.f32 %v1132, %v1264
        %v1266 = vpop.f32.mrb[0].mxu0
        %v1267 = vpop.f32.mrb[0].mxu0
        %v1268 = vadd.f32 %v1132, %v1267
        %v1269 = vpop.f32.mrb[0].mxu0
        %1270 = vmatprep.mubr.bf16.mxu0 %v1092
        %1271 = vmatmul.mubr.bf16.gmra.mrb[0].mxu0 %v1091
        %v1272 = vpop.f32.mrb[0].mxu0
        %v1273 = vadd.f32 %v1132, %v1272
        %v1274 = vpop.f32.mrb[0].mxu0
        %v1275 = vpop.f32.mrb[0].mxu0
        %v1276 = vadd.f32 %v1132, %v1275
        %v1277 = vpop.f32.mrb[0].mxu0
        %1278 = vdwg.mxu0
        %v1279 = vmax.f32 %v1265, 0.0
        %v1280 = vmax.f32 %v1268, 0.0
        %v1281 = vmax.f32 %v1273, 0.0
        %v1282 = vmax.f32 %v1276, 0.0
        %v1283 = vpack.c.bf16 %v1280, %v1279
        %v1284 = vpack.c.bf16 %v1282, %v1281
        %s1285 = scalar_lea.vmem %s5, 64
        %v1286 = vld [vmem:[%s1285] sm:$0xf]
        %v1287 = vld [vmem:[%s1285 + $0x4] sm:$0xf]
        %v1288 = vld [vmem:[%s1285 + $0x8] sm:$0xf]
        %v1289 = vld [vmem:[%s1285 + $0xc] sm:$0xf]
        %v1290 = vld [vmem:[%s1285 + $0x10] sm:$0xf]
        %v1291 = vld [vmem:[%s1285 + $0x14] sm:$0xf]
        %v1292 = vld [vmem:[%s1285 + $0x18] sm:$0xf]
        %v1293 = vld [vmem:[%s1285 + $0x1c] sm:$0xf]
        %v1294 = vld [vmem:[%s1285 + $0x20] sm:$0xf]
        %v1295 = vld [vmem:[%s1285 + $0x24] sm:$0xf]
        %v1296 = vld [vmem:[%s1285 + $0x28] sm:$0xf]
        %v1297 = vld [vmem:[%s1285 + $0x2c] sm:$0xf]
        %v1298 = vld [vmem:[%s1285 + $0x30] sm:$0xf]
        %v1299 = vld [vmem:[%s1285 + $0x34] sm:$0xf]
        %v1300 = vld [vmem:[%s1285 + $0x38] sm:$0xf]
        %v1301 = vld [vmem:[%s1285 + $0x3c] sm:$0xf]
        %s1302 = scalar_lea.vmem %s6, 1
        %v1303 = vld [vmem:[%s1302] sm:$0x1]
        %v1305 = vlaneseq
        %v1306 = vshrl.u32 %v1305, 7
        %v1307 = vsub.s32 0, %v1306
        %v1308 = vrot.slane %v1303, %v1307
        %v1326 = vunpack.c.l.b16 %v1286
        %v1327 = vunpack.c.l.b16 %v1287
        %v1328 = vunpack.c.l.b16 %v1288
        %v1329 = vunpack.c.l.b16 %v1289
        %v1330 = vunpack.c.l.b16 %v1290
        %v1331 = vunpack.c.l.b16 %v1291
        %v1332 = vunpack.c.l.b16 %v1292
        %v1333 = vunpack.c.l.b16 %v1293
        %v1334 = vunpack.c.l.b16 %v1294
        %v1335 = vunpack.c.l.b16 %v1295
        %v1336 = vunpack.c.l.b16 %v1296
        %v1337 = vunpack.c.l.b16 %v1297
        %v1338 = vunpack.c.l.b16 %v1298
        %v1339 = vunpack.c.l.b16 %v1299
        %v1340 = vunpack.c.l.b16 %v1300
        %v1341 = vunpack.c.l.b16 %v1301
        %v1342 = vpack.c.b16 %v1327, %v1326
        %v1343 = vpack.c.b16 %v1329, %v1328
        %v1344 = vpack.c.b16 %v1331, %v1330
        %v1345 = vpack.c.b16 %v1333, %v1332
        %v1346 = vpack.c.b16 %v1335, %v1334
        %v1347 = vpack.c.b16 %v1337, %v1336
        %v1348 = vpack.c.b16 %v1339, %v1338
        %v1349 = vpack.c.b16 %v1341, %v1340
        %1358 = vmatprep.subr.bf16.mxu0 0
        %1359 = vmatpush1.bf16.msra.mxu0 %v1342
        %1360 = vmatprep.subr.bf16.mxu0 0
        %1361 = vmatpush1.bf16.msra.mxu0 %v1343
        %1362 = vmatprep.subr.bf16.mxu0 0
        %1363 = vmatpush1.bf16.msra.mxu0 %v1344
        %1364 = vmatprep.subr.bf16.mxu0 0
        %1365 = vmatpush1.bf16.msra.mxu0 %v1345
        %1366 = vmatprep.subr.bf16.mxu0 0
        %1367 = vmatpush1.bf16.msra.mxu0 %v1346
        %1368 = vmatprep.subr.bf16.mxu0 0
        %1369 = vmatpush1.bf16.msra.mxu0 %v1347
        %1370 = vmatprep.subr.bf16.mxu0 0
        %1371 = vmatpush1.bf16.msra.mxu0 %v1348
        %1372 = vmatprep.subr.bf16.mxu0 0
        %1373 = vmatpush1.bf16.msra.mxu0 %v1349
        %1374 = vmatprep.subr.bf16.mxu0 0
        %1375 = vmatpush1.bf16.msra.mxu0 0
        %1376 = vmatprep.subr.bf16.mxu0 0
        %1377 = vmatpush1.bf16.msra.mxu0 0
        %1378 = vmatprep.subr.bf16.mxu0 0
        %1379 = vmatpush1.bf16.msra.mxu0 0
        %1380 = vmatprep.subr.bf16.mxu0 0
        %1381 = vmatpush1.bf16.msra.mxu0 0
        %1382 = vmatprep.subr.bf16.mxu0 0
        %1383 = vmatpush1.bf16.msra.mxu0 0
        %1384 = vmatprep.subr.bf16.mxu0 0
        %1385 = vmatpush1.bf16.msra.mxu0 0
        %1386 = vmatprep.subr.bf16.mxu0 0
        %1387 = vmatpush1.bf16.msra.mxu0 0
        %1388 = vmatprep.subr.bf16.mxu0 0
        %1389 = vmatpush1.bf16.msra.mxu0 0
        %1390 = vmatprep.mubr.bf16.mxu0 0
        %1391 = vmatmul.mubr.bf16.gmra.mrb[0].mxu0 %v1283
        %v1392 = vpop.f32.mrb[0].mxu0
        %v1393 = vadd.f32 %v1308, %v1392
        %v1394 = vpop.f32.mrb[0].mxu0
        %v1395 = vpop.f32.mrb[0].mxu0
        %v1396 = vadd.f32 %v1308, %v1395
        %v1397 = vpop.f32.mrb[0].mxu0
        %1398 = vmatprep.mubr.bf16.mxu0 0
        %1399 = vmatmul.mubr.bf16.gmra.mrb[0].mxu0 %v1284
        %v1400 = vpop.f32.mrb[0].mxu0
        %v1401 = vadd.f32 %v1308, %v1400
        %v1402 = vpop.f32.mrb[0].mxu0
        %v1403 = vpop.f32.mrb[0].mxu0
        %v1404 = vadd.f32 %v1308, %v1403
        %v1405 = vpop.f32.mrb[0].mxu0
        %1406 = vdwg.mxu0
        %v1407 = vmax.f32 %v1393, 0.0
        %v1408 = vmax.f32 %v1396, 0.0
        %v1409 = vmax.f32 %v1401, 0.0
        %v1410 = vmax.f32 %v1404, 0.0
        %v1411 = vpack.c.bf16 %v1408, %v1407
        %v1412 = vpack.c.bf16 %v1410, %v1409
        %s1413 = scalar_lea.vmem %s7, 32
        %v1414 = vld [vmem:[%s1413] sm:$0xf]
        %v1415 = vld [vmem:[%s1413 + $0x4] sm:$0xf]
        %v1416 = vld [vmem:[%s1413 + $0x8] sm:$0xf]
        %v1417 = vld [vmem:[%s1413 + $0xc] sm:$0xf]
        %v1418 = vld [vmem:[%s1413 + $0x10] sm:$0xf]
        %v1419 = vld [vmem:[%s1413 + $0x14] sm:$0xf]
        %v1420 = vld [vmem:[%s1413 + $0x18] sm:$0xf]
        %v1421 = vld [vmem:[%s1413 + $0x1c] sm:$0xf]
        %v1430 = vunpack.c.l.b16 %v1414
        %v1431 = vunpack.c.l.b16 %v1415
        %v1432 = vunpack.c.l.b16 %v1416
        %v1433 = vunpack.c.l.b16 %v1417
        %v1434 = vunpack.c.l.b16 %v1418
        %v1435 = vunpack.c.l.b16 %v1419
        %v1436 = vunpack.c.l.b16 %v1420
        %v1437 = vunpack.c.l.b16 %v1421
        %v1438 = vpack.c.b16 %v1431, %v1430
        %v1439 = vpack.c.b16 %v1433, %v1432
        %v1440 = vpack.c.b16 %v1435, %v1434
        %v1441 = vpack.c.b16 %v1437, %v1436
        %vm1446 = vcmask 523264
        %v1448 = vsel %vm1446, %v1411, 0
        %v1451 = vsel %vm1446, %v1412, 0
        %1453 = vmatprep.subr.bf16.mxu0 0
        %1454 = vmatpush1.bf16.msra.mxu0 %v1438
        %1455 = vmatprep.subr.bf16.mxu0 0
        %1456 = vmatpush1.bf16.msra.mxu0 %v1439
        %1457 = vmatprep.subr.bf16.mxu0 0
        %1458 = vmatpush1.bf16.msra.mxu0 %v1440
        %1459 = vmatprep.subr.bf16.mxu0 0
        %1460 = vmatpush1.bf16.msra.mxu0 %v1441
        %1461 = vmatprep.subr.bf16.mxu0 0
        %1462 = vmatpush1.bf16.msra.mxu0 0
        %1463 = vmatprep.subr.bf16.mxu0 0
        %1464 = vmatpush1.bf16.msra.mxu0 0
        %1465 = vmatprep.subr.bf16.mxu0 0
        %1466 = vmatpush1.bf16.msra.mxu0 0
        %1467 = vmatprep.subr.bf16.mxu0 0
        %1468 = vmatpush1.bf16.msra.mxu0 0
        %1469 = vmatprep.subr.bf16.mxu0 0
        %1470 = vmatpush1.bf16.msra.mxu0 0
        %1471 = vmatprep.subr.bf16.mxu0 0
        %1472 = vmatpush1.bf16.msra.mxu0 0
        %1473 = vmatprep.subr.bf16.mxu0 0
        %1474 = vmatpush1.bf16.msra.mxu0 0
        %1475 = vmatprep.subr.bf16.mxu0 0
        %1476 = vmatpush1.bf16.msra.mxu0 0
        %1477 = vmatprep.subr.bf16.mxu0 0
        %1478 = vmatpush1.bf16.msra.mxu0 0
        %1479 = vmatprep.subr.bf16.mxu0 0
        %1480 = vmatpush1.bf16.msra.mxu0 0
        %1481 = vmatprep.subr.bf16.mxu0 0
        %1482 = vmatpush1.bf16.msra.mxu0 0
        %1483 = vmatprep.subr.bf16.mxu0 0
        %1484 = vmatpush1.bf16.msra.mxu0 0
        %1485 = vmatprep.mubr.bf16.mxu0 0
        %1486 = vmatmul.mubr.bf16.gmra.mrb[0].mxu0 %v1448
        %v1487 = vpop.f32.mrb[0].mxu0
        %v1488 = vadd.f32 0.0, %v1487
        %v1489 = vpop.f32.mrb[0].mxu0
        %v1490 = vpop.f32.mrb[0].mxu0
        %v1491 = vadd.f32 0.0, %v1490
        %v1492 = vpop.f32.mrb[0].mxu0
        %1493 = vmatprep.mubr.bf16.mxu0 0
        %1494 = vmatmul.mubr.bf16.gmra.mrb[0].mxu0 %v1451
        %v1495 = vpop.f32.mrb[0].mxu0
        %v1496 = vadd.f32 0.0, %v1495
        %v1497 = vpop.f32.mrb[0].mxu0
        %v1498 = vpop.f32.mrb[0].mxu0
        %v1499 = vadd.f32 0.0, %v1498
        %v1500 = vpop.f32.mrb[0].mxu0
        %1501 = vdwg.mxu0
        %v1510 = vunpack.c.l.b16 %v904
        %v1511 = vunpack.c.l.b16 %v905
        %v1512 = vunpack.c.l.b16 %v906
        %v1513 = vunpack.c.l.b16 %v907
        %v1514 = vunpack.c.l.b16 %v908
        %v1515 = vunpack.c.l.b16 %v909
        %v1516 = vunpack.c.l.b16 %v910
        %v1517 = vunpack.c.l.b16 %v911
        %v1518 = vpack.c.b16 %v1511, %v1510
        %v1519 = vpack.c.b16 %v1513, %v1512
        %v1520 = vpack.c.b16 %v1515, %v1514
        %v1521 = vpack.c.b16 %v1517, %v1516
        %v1527 = vsel %vm1446, %v902, 0
        %v1530 = vsel %vm1446, %v903, 0
        %1532 = vmatprep.subr.bf16.mxu0 0
        %1533 = vmatpush1.bf16.msra.mxu0 %v1518
        %1534 = vmatprep.subr.bf16.mxu0 0
        %1535 = vmatpush1.bf16.msra.mxu0 %v1519
        %1536 = vmatprep.subr.bf16.mxu0 0
        %1537 = vmatpush1.bf16.msra.mxu0 %v1520
        %1538 = vmatprep.subr.bf16.mxu0 0
        %1539 = vmatpush1.bf16.msra.mxu0 %v1521
        %1540 = vmatprep.subr.bf16.mxu0 0
        %1541 = vmatpush1.bf16.msra.mxu0 0
        %1542 = vmatprep.subr.bf16.mxu0 0
        %1543 = vmatpush1.bf16.msra.mxu0 0
        %1544 = vmatprep.subr.bf16.mxu0 0
        %1545 = vmatpush1.bf16.msra.mxu0 0
        %1546 = vmatprep.subr.bf16.mxu0 0
        %1547 = vmatpush1.bf16.msra.mxu0 0
        %1548 = vmatprep.subr.bf16.mxu0 0
        %1549 = vmatpush1.bf16.msra.mxu0 0
        %1550 = vmatprep.subr.bf16.mxu0 0
        %1551 = vmatpush1.bf16.msra.mxu0 0
        %1552 = vmatprep.subr.bf16.mxu0 0
        %1553 = vmatpush1.bf16.msra.mxu0 0
        %1554 = vmatprep.subr.bf16.mxu0 0
        %1555 = vmatpush1.bf16.msra.mxu0 0
        %1556 = vmatprep.subr.bf16.mxu0 0
        %1557 = vmatpush1.bf16.msra.mxu0 0
        %1558 = vmatprep.subr.bf16.mxu0 0
        %1559 = vmatpush1.bf16.msra.mxu0 0
        %1560 = vmatprep.subr.bf16.mxu0 0
        %1561 = vmatpush1.bf16.msra.mxu0 0
        %1562 = vmatprep.subr.bf16.mxu0 0
        %1563 = vmatpush1.bf16.msra.mxu0 0
        %1564 = vmatprep.mubr.bf16.mxu0 0
        %1565 = vmatmul.mubr.bf16.gmra.mrb[0].mxu0 %v1527
        %v1566 = vpop.f32.mrb[0].mxu0
        %v1567 = vadd.f32 %v1488, %v1566
        %v1568 = vpop.f32.mrb[0].mxu0
        %v1569 = vpop.f32.mrb[0].mxu0
        %v1570 = vadd.f32 %v1491, %v1569
        %v1571 = vpop.f32.mrb[0].mxu0
        %1572 = vmatprep.mubr.bf16.mxu0 0
        %1573 = vmatmul.mubr.bf16.gmra.mrb[0].mxu0 %v1530
        %v1574 = vpop.f32.mrb[0].mxu0
        %v1575 = vadd.f32 %v1496, %v1574
        %v1576 = vpop.f32.mrb[0].mxu0
        %v1577 = vpop.f32.mrb[0].mxu0
        %v1578 = vadd.f32 %v1499, %v1577
        %v1579 = vpop.f32.mrb[0].mxu0
        %1580 = vdwg.mxu0
        %v1581 = vld [vmem:[%s400 + $0x10] sm:$0xff]
        %v1582 = vld [vmem:[%s400 + $0x30] sm:$0xff]
        %v1583 = vld [vmem:[%s400 + $0x50] sm:$0xff]
        %v1584 = vld [vmem:[%s400 + $0x70] sm:$0xff]
        %v1585 = vpack.c.bf16 %v1582, %v1581
        %v1586 = vpack.c.bf16 %v1584, %v1583
        %s1587 = scalar_lea.vmem %s1, 256
        %v1588 = vld [vmem:[%s1587] sm:$0xff]
        %v1589 = vld [vmem:[%s1587 + $0x8] sm:$0xff]
        %v1590 = vld [vmem:[%s1587 + $0x10] sm:$0xff]
        %v1591 = vld [vmem:[%s1587 + $0x18] sm:$0xff]
        %v1592 = vld [vmem:[%s1587 + $0x20] sm:$0xff]
        %v1593 = vld [vmem:[%s1587 + $0x28] sm:$0xff]
        %v1594 = vld [vmem:[%s1587 + $0x30] sm:$0xff]
        %v1595 = vld [vmem:[%s1587 + $0x38] sm:$0xff]
        %v1596 = vld [vmem:[%s1587 + $0x40] sm:$0xff]
        %v1597 = vld [vmem:[%s1587 + $0x48] sm:$0xff]
        %v1598 = vld [vmem:[%s1587 + $0x50] sm:$0xff]
        %v1599 = vld [vmem:[%s1587 + $0x58] sm:$0xff]
        %v1600 = vld [vmem:[%s1587 + $0x60] sm:$0xff]
        %v1601 = vld [vmem:[%s1587 + $0x68] sm:$0xff]
        %v1602 = vld [vmem:[%s1587 + $0x70] sm:$0xff]
        %v1603 = vld [vmem:[%s1587 + $0x78] sm:$0xff]
        %s1604 = scalar_lea.vmem %s2, 4
        %v1605 = vld [vmem:[%s1604] sm:$0x3]
        %v1607 = vlaneseq
        %v1608 = vshrl.u32 %v1607, 7
        %v1609 = vsub.s32 0, %v1608
        %v1610 = vrot.slane %v1605, %v1609
        %v1611 = vlaneseq
        %v1612 = vshrl.u32 %v1611, 7
        %v1613 = vsub.s32 1, %v1612
        %v1614 = vrot.slane %v1605, %v1613
        %v1633 = vunpack.c.l.b16 %v1588
        %v1634 = vunpack.c.h.b16 %v1588
        %v1635 = vunpack.c.l.b16 %v1589
        %v1636 = vunpack.c.h.b16 %v1589
        %v1637 = vunpack.c.l.b16 %v1590
        %v1638 = vunpack.c.h.b16 %v1590
        %v1639 = vunpack.c.l.b16 %v1591
        %v1640 = vunpack.c.h.b16 %v1591
        %v1641 = vunpack.c.l.b16 %v1592
        %v1642 = vunpack.c.h.b16 %v1592
        %v1643 = vunpack.c.l.b16 %v1593
        %v1644 = vunpack.c.h.b16 %v1593
        %v1645 = vunpack.c.l.b16 %v1594
        %v1646 = vunpack.c.h.b16 %v1594
        %v1647 = vunpack.c.l.b16 %v1595
        %v1648 = vunpack.c.h.b16 %v1595
        %v1649 = vunpack.c.l.b16 %v1596
        %v1650 = vunpack.c.h.b16 %v1596
        %v1651 = vunpack.c.l.b16 %v1597
        %v1652 = vunpack.c.h.b16 %v1597
        %v1653 = vunpack.c.l.b16 %v1598
        %v1654 = vunpack.c.h.b16 %v1598
        %v1655 = vunpack.c.l.b16 %v1599
        %v1656 = vunpack.c.h.b16 %v1599
        %v1657 = vunpack.c.l.b16 %v1600
        %v1658 = vunpack.c.h.b16 %v1600
        %v1659 = vunpack.c.l.b16 %v1601
        %v1660 = vunpack.c.h.b16 %v1601
        %v1661 = vunpack.c.l.b16 %v1602
        %v1662 = vunpack.c.h.b16 %v1602
        %v1663 = vunpack.c.l.b16 %v1603
        %v1664 = vunpack.c.h.b16 %v1603
        %v1665 = vpack.c.b16 %v1635, %v1633
        %v1666 = vpack.c.b16 %v1636, %v1634
        %v1667 = vpack.c.b16 %v1639, %v1637
        %v1668 = vpack.c.b16 %v1640, %v1638
        %v1669 = vpack.c.b16 %v1643, %v1641
        %v1670 = vpack.c.b16 %v1644, %v1642
        %v1671 = vpack.c.b16 %v1647, %v1645
        %v1672 = vpack.c.b16 %v1648, %v1646
        %v1673 = vpack.c.b16 %v1651, %v1649
        %v1674 = vpack.c.b16 %v1652, %v1650
        %v1675 = vpack.c.b16 %v1655, %v1653
        %v1676 = vpack.c.b16 %v1656, %v1654
        %v1677 = vpack.c.b16 %v1659, %v1657
        %v1678 = vpack.c.b16 %v1660, %v1658
        %v1679 = vpack.c.b16 %v1663, %v1661
        %v1680 = vpack.c.b16 %v1664, %v1662
        %1697 = vmatprep.subr.bf16.mxu0 %v1666
        %1698 = vmatpush1.bf16.msra.mxu0 %v1665
        %1699 = vmatprep.subr.bf16.mxu0 %v1668
        %1700 = vmatpush1.bf16.msra.mxu0 %v1667
        %1701 = vmatprep.subr.bf16.mxu0 %v1670
        %1702 = vmatpush1.bf16.msra.mxu0 %v1669
        %1703 = vmatprep.subr.bf16.mxu0 %v1672
        %1704 = vmatpush1.bf16.msra.mxu0 %v1671
        %1705 = vmatprep.subr.bf16.mxu0 %v1674
        %1706 = vmatpush1.bf16.msra.mxu0 %v1673
        %1707 = vmatprep.subr.bf16.mxu0 %v1676
        %1708 = vmatpush1.bf16.msra.mxu0 %v1675
        %1709 = vmatprep.subr.bf16.mxu0 %v1678
        %1710 = vmatpush1.bf16.msra.mxu0 %v1677
        %1711 = vmatprep.subr.bf16.mxu0 %v1680
        %1712 = vmatpush1.bf16.msra.mxu0 %v1679
        %1713 = vmatprep.subr.bf16.mxu0 0
        %1714 = vmatpush1.bf16.msra.mxu0 0
        %1715 = vmatprep.subr.bf16.mxu0 0
        %1716 = vmatpush1.bf16.msra.mxu0 0
        %1717 = vmatprep.subr.bf16.mxu0 0
        %1718 = vmatpush1.bf16.msra.mxu0 0
        %1719 = vmatprep.subr.bf16.mxu0 0
        %1720 = vmatpush1.bf16.msra.mxu0 0
        %1721 = vmatprep.subr.bf16.mxu0 0
        %1722 = vmatpush1.bf16.msra.mxu0 0
        %1723 = vmatprep.subr.bf16.mxu0 0
        %1724 = vmatpush1.bf16.msra.mxu0 0
        %1725 = vmatprep.subr.bf16.mxu0 0
        %1726 = vmatpush1.bf16.msra.mxu0 0
        %1727 = vmatprep.subr.bf16.mxu0 0
        %1728 = vmatpush1.bf16.msra.mxu0 0
        %1729 = vmatprep.mubr.bf16.mxu0 0
        %1730 = vmatmul.mubr.bf16.gmra.mrb[0].mxu0 %v1585
        %v1731 = vpop.f32.mrb[0].mxu0
        %v1732 = vadd.f32 %v1610, %v1731
        %v1733 = vpop.f32.mrb[0].mxu0
        %v1734 = vadd.f32 %v1614, %v1733
        %v1735 = vpop.f32.mrb[0].mxu0
        %v1736 = vadd.f32 %v1610, %v1735
        %v1737 = vpop.f32.mrb[0].mxu0
        %v1738 = vadd.f32 %v1614, %v1737
        %1739 = vmatprep.mubr.bf16.mxu0 0
        %1740 = vmatmul.mubr.bf16.gmra.mrb[0].mxu0 %v1586
        %v1741 = vpop.f32.mrb[0].mxu0
        %v1742 = vadd.f32 %v1610, %v1741
        %v1743 = vpop.f32.mrb[0].mxu0
        %v1744 = vadd.f32 %v1614, %v1743
        %v1745 = vpop.f32.mrb[0].mxu0
        %v1746 = vadd.f32 %v1610, %v1745
        %v1747 = vpop.f32.mrb[0].mxu0
        %v1748 = vadd.f32 %v1614, %v1747
        %1749 = vdwg.mxu0
        %v1750 = vmax.f32 %v1732, 0.0
        %v1751 = vmax.f32 %v1734, 0.0
        %v1752 = vmax.f32 %v1736, 0.0
        %v1753 = vmax.f32 %v1738, 0.0
        %v1754 = vmax.f32 %v1742, 0.0
        %v1755 = vmax.f32 %v1744, 0.0
        %v1756 = vmax.f32 %v1746, 0.0
        %v1757 = vmax.f32 %v1748, 0.0
        %v1758 = vpack.c.bf16 %v1752, %v1750
        %v1759 = vpack.c.bf16 %v1753, %v1751
        %v1760 = vpack.c.bf16 %v1756, %v1754
        %v1761 = vpack.c.bf16 %v1757, %v1755
        %s1762 = scalar_lea.vmem [#allocation2], 256
        %v1763 = vld [vmem:[%s1762] sm:$0xf]
        %v1764 = vld [vmem:[%s1762 + $0x4] sm:$0xf]
        %v1765 = vld [vmem:[%s1762 + $0x8] sm:$0xf]
        %v1766 = vld [vmem:[%s1762 + $0xc] sm:$0xf]
        %v1767 = vld [vmem:[%s1762 + $0x10] sm:$0xf]
        %v1768 = vld [vmem:[%s1762 + $0x14] sm:$0xf]
        %v1769 = vld [vmem:[%s1762 + $0x18] sm:$0xf]
        %v1770 = vld [vmem:[%s1762 + $0x1c] sm:$0xf]
        %v1771 = vld [vmem:[%s1762 + $0x20] sm:$0xf]
        %v1772 = vld [vmem:[%s1762 + $0x24] sm:$0xf]
        %v1773 = vld [vmem:[%s1762 + $0x28] sm:$0xf]
        %v1774 = vld [vmem:[%s1762 + $0x2c] sm:$0xf]
        %v1775 = vld [vmem:[%s1762 + $0x30] sm:$0xf]
        %v1776 = vld [vmem:[%s1762 + $0x34] sm:$0xf]
        %v1777 = vld [vmem:[%s1762 + $0x38] sm:$0xf]
        %v1778 = vld [vmem:[%s1762 + $0x3c] sm:$0xf]
        %v1779 = vld [vmem:[%s1762 + $0x40] sm:$0xf]
        %v1780 = vld [vmem:[%s1762 + $0x44] sm:$0xf]
        %v1781 = vld [vmem:[%s1762 + $0x48] sm:$0xf]
        %v1782 = vld [vmem:[%s1762 + $0x4c] sm:$0xf]
        %v1783 = vld [vmem:[%s1762 + $0x50] sm:$0xf]
        %v1784 = vld [vmem:[%s1762 + $0x54] sm:$0xf]
        %v1785 = vld [vmem:[%s1762 + $0x58] sm:$0xf]
        %v1786 = vld [vmem:[%s1762 + $0x5c] sm:$0xf]
        %v1787 = vld [vmem:[%s1762 + $0x60] sm:$0xf]
        %v1788 = vld [vmem:[%s1762 + $0x64] sm:$0xf]
        %v1789 = vld [vmem:[%s1762 + $0x68] sm:$0xf]
        %v1790 = vld [vmem:[%s1762 + $0x6c] sm:$0xf]
        %v1791 = vld [vmem:[%s1762 + $0x70] sm:$0xf]
        %v1792 = vld [vmem:[%s1762 + $0x74] sm:$0xf]
        %v1793 = vld [vmem:[%s1762 + $0x78] sm:$0xf]
        %v1794 = vld [vmem:[%s1762 + $0x7c] sm:$0xf]
        %s1795 = scalar_lea.vmem %s4, 2
        %v1796 = vld [vmem:[%s1795] sm:$0x1]
        %v1798 = vlaneseq
        %v1799 = vshrl.u32 %v1798, 7
        %v1800 = vsub.s32 0, %v1799
        %v1801 = vrot.slane %v1796, %v1800
        %v1835 = vunpack.c.l.b16 %v1763
        %v1836 = vunpack.c.l.b16 %v1764
        %v1837 = vunpack.c.l.b16 %v1765
        %v1838 = vunpack.c.l.b16 %v1766
        %v1839 = vunpack.c.l.b16 %v1767
        %v1840 = vunpack.c.l.b16 %v1768
        %v1841 = vunpack.c.l.b16 %v1769
        %v1842 = vunpack.c.l.b16 %v1770
        %v1843 = vunpack.c.l.b16 %v1771
        %v1844 = vunpack.c.l.b16 %v1772
        %v1845 = vunpack.c.l.b16 %v1773
        %v1846 = vunpack.c.l.b16 %v1774
        %v1847 = vunpack.c.l.b16 %v1775
        %v1848 = vunpack.c.l.b16 %v1776
        %v1849 = vunpack.c.l.b16 %v1777
        %v1850 = vunpack.c.l.b16 %v1778
        %v1851 = vunpack.c.l.b16 %v1779
        %v1852 = vunpack.c.l.b16 %v1780
        %v1853 = vunpack.c.l.b16 %v1781
        %v1854 = vunpack.c.l.b16 %v1782
        %v1855 = vunpack.c.l.b16 %v1783
        %v1856 = vunpack.c.l.b16 %v1784
        %v1857 = vunpack.c.l.b16 %v1785
        %v1858 = vunpack.c.l.b16 %v1786
        %v1859 = vunpack.c.l.b16 %v1787
        %v1860 = vunpack.c.l.b16 %v1788
        %v1861 = vunpack.c.l.b16 %v1789
        %v1862 = vunpack.c.l.b16 %v1790
        %v1863 = vunpack.c.l.b16 %v1791
        %v1864 = vunpack.c.l.b16 %v1792
        %v1865 = vunpack.c.l.b16 %v1793
        %v1866 = vunpack.c.l.b16 %v1794
        %v1867 = vpack.c.b16 %v1836, %v1835
        %v1868 = vpack.c.b16 %v1838, %v1837
        %v1869 = vpack.c.b16 %v1840, %v1839
        %v1870 = vpack.c.b16 %v1842, %v1841
        %v1871 = vpack.c.b16 %v1844, %v1843
        %v1872 = vpack.c.b16 %v1846, %v1845
        %v1873 = vpack.c.b16 %v1848, %v1847
        %v1874 = vpack.c.b16 %v1850, %v1849
        %v1875 = vpack.c.b16 %v1852, %v1851
        %v1876 = vpack.c.b16 %v1854, %v1853
        %v1877 = vpack.c.b16 %v1856, %v1855
        %v1878 = vpack.c.b16 %v1858, %v1857
        %v1879 = vpack.c.b16 %v1860, %v1859
        %v1880 = vpack.c.b16 %v1862, %v1861
        %v1881 = vpack.c.b16 %v1864, %v1863
        %v1882 = vpack.c.b16 %v1866, %v1865
        %1899 = vmatprep.subr.bf16.mxu0 0
        %1900 = vmatpush1.bf16.msra.mxu0 %v1867
        %1901 = vmatprep.subr.bf16.mxu0 0
        %1902 = vmatpush1.bf16.msra.mxu0 %v1868
        %1903 = vmatprep.subr.bf16.mxu0 0
        %1904 = vmatpush1.bf16.msra.mxu0 %v1869
        %1905 = vmatprep.subr.bf16.mxu0 0
        %1906 = vmatpush1.bf16.msra.mxu0 %v1870
        %1907 = vmatprep.subr.bf16.mxu0 0
        %1908 = vmatpush1.bf16.msra.mxu0 %v1871
        %1909 = vmatprep.subr.bf16.mxu0 0
        %1910 = vmatpush1.bf16.msra.mxu0 %v1872
        %1911 = vmatprep.subr.bf16.mxu0 0
        %1912 = vmatpush1.bf16.msra.mxu0 %v1873
        %1913 = vmatprep.subr.bf16.mxu0 0
        %1914 = vmatpush1.bf16.msra.mxu0 %v1874
        %1915 = vmatprep.subr.bf16.mxu0 0
        %1916 = vmatpush1.bf16.msra.mxu0 %v1875
        %1917 = vmatprep.subr.bf16.mxu0 0
        %1918 = vmatpush1.bf16.msra.mxu0 %v1876
        %1919 = vmatprep.subr.bf16.mxu0 0
        %1920 = vmatpush1.bf16.msra.mxu0 %v1877
        %1921 = vmatprep.subr.bf16.mxu0 0
        %1922 = vmatpush1.bf16.msra.mxu0 %v1878
        %1923 = vmatprep.subr.bf16.mxu0 0
        %1924 = vmatpush1.bf16.msra.mxu0 %v1879
        %1925 = vmatprep.subr.bf16.mxu0 0
        %1926 = vmatpush1.bf16.msra.mxu0 %v1880
        %1927 = vmatprep.subr.bf16.mxu0 0
        %1928 = vmatpush1.bf16.msra.mxu0 %v1881
        %1929 = vmatprep.subr.bf16.mxu0 0
        %1930 = vmatpush1.bf16.msra.mxu0 %v1882
        %1931 = vmatprep.mubr.bf16.mxu0 %v1759
        %1932 = vmatmul.mubr.bf16.gmra.mrb[0].mxu0 %v1758
        %v1933 = vpop.f32.mrb[0].mxu0
        %v1934 = vadd.f32 %v1801, %v1933
        %v1935 = vpop.f32.mrb[0].mxu0
        %v1936 = vpop.f32.mrb[0].mxu0
        %v1937 = vadd.f32 %v1801, %v1936
        %v1938 = vpop.f32.mrb[0].mxu0
        %1939 = vmatprep.mubr.bf16.mxu0 %v1761
        %1940 = vmatmul.mubr.bf16.gmra.mrb[0].mxu0 %v1760
        %v1941 = vpop.f32.mrb[0].mxu0
        %v1942 = vadd.f32 %v1801, %v1941
        %v1943 = vpop.f32.mrb[0].mxu0
        %v1944 = vpop.f32.mrb[0].mxu0
        %v1945 = vadd.f32 %v1801, %v1944
        %v1946 = vpop.f32.mrb[0].mxu0
        %1947 = vdwg.mxu0
        %v1948 = vmax.f32 %v1934, 0.0
        %v1949 = vmax.f32 %v1937, 0.0
        %v1950 = vmax.f32 %v1942, 0.0
        %v1951 = vmax.f32 %v1945, 0.0
        %v1952 = vpack.c.bf16 %v1949, %v1948
        %v1953 = vpack.c.bf16 %v1951, %v1950
        %s1954 = scalar_lea.vmem %s5, 128
        %v1955 = vld [vmem:[%s1954] sm:$0xf]
        %v1956 = vld [vmem:[%s1954 + $0x4] sm:$0xf]
        %v1957 = vld [vmem:[%s1954 + $0x8] sm:$0xf]
        %v1958 = vld [vmem:[%s1954 + $0xc] sm:$0xf]
        %v1959 = vld [vmem:[%s1954 + $0x10] sm:$0xf]
        %v1960 = vld [vmem:[%s1954 + $0x14] sm:$0xf]
        %v1961 = vld [vmem:[%s1954 + $0x18] sm:$0xf]
        %v1962 = vld [vmem:[%s1954 + $0x1c] sm:$0xf]
        %v1963 = vld [vmem:[%s1954 + $0x20] sm:$0xf]
        %v1964 = vld [vmem:[%s1954 + $0x24] sm:$0xf]
        %v1965 = vld [vmem:[%s1954 + $0x28] sm:$0xf]
        %v1966 = vld [vmem:[%s1954 + $0x2c] sm:$0xf]
        %v1967 = vld [vmem:[%s1954 + $0x30] sm:$0xf]
        %v1968 = vld [vmem:[%s1954 + $0x34] sm:$0xf]
        %v1969 = vld [vmem:[%s1954 + $0x38] sm:$0xf]
        %v1970 = vld [vmem:[%s1954 + $0x3c] sm:$0xf]
        %s1971 = scalar_lea.vmem %s6, 2
        %v1972 = vld [vmem:[%s1971] sm:$0x1]
        %v1974 = vlaneseq
        %v1975 = vshrl.u32 %v1974, 7
        %v1976 = vsub.s32 0, %v1975
        %v1977 = vrot.slane %v1972, %v1976
        %v1995 = vunpack.c.l.b16 %v1955
        %v1996 = vunpack.c.l.b16 %v1956
        %v1997 = vunpack.c.l.b16 %v1957
        %v1998 = vunpack.c.l.b16 %v1958
        %v1999 = vunpack.c.l.b16 %v1959
        %v2000 = vunpack.c.l.b16 %v1960
        %v2001 = vunpack.c.l.b16 %v1961
        %v2002 = vunpack.c.l.b16 %v1962
        %v2003 = vunpack.c.l.b16 %v1963
        %v2004 = vunpack.c.l.b16 %v1964
        %v2005 = vunpack.c.l.b16 %v1965
        %v2006 = vunpack.c.l.b16 %v1966
        %v2007 = vunpack.c.l.b16 %v1967
        %v2008 = vunpack.c.l.b16 %v1968
        %v2009 = vunpack.c.l.b16 %v1969
        %v2010 = vunpack.c.l.b16 %v1970
        %v2011 = vpack.c.b16 %v1996, %v1995
        %v2012 = vpack.c.b16 %v1998, %v1997
        %v2013 = vpack.c.b16 %v2000, %v1999
        %v2014 = vpack.c.b16 %v2002, %v2001
        %v2015 = vpack.c.b16 %v2004, %v2003
        %v2016 = vpack.c.b16 %v2006, %v2005
        %v2017 = vpack.c.b16 %v2008, %v2007
        %v2018 = vpack.c.b16 %v2010, %v2009
        %2027 = vmatprep.subr.bf16.mxu0 0
        %2028 = vmatpush1.bf16.msra.mxu0 %v2011
        %2029 = vmatprep.subr.bf16.mxu0 0
        %2030 = vmatpush1.bf16.msra.mxu0 %v2012
        %2031 = vmatprep.subr.bf16.mxu0 0
        %2032 = vmatpush1.bf16.msra.mxu0 %v2013
        %2033 = vmatprep.subr.bf16.mxu0 0
        %2034 = vmatpush1.bf16.msra.mxu0 %v2014
        %2035 = vmatprep.subr.bf16.mxu0 0
        %2036 = vmatpush1.bf16.msra.mxu0 %v2015
        %2037 = vmatprep.subr.bf16.mxu0 0
        %2038 = vmatpush1.bf16.msra.mxu0 %v2016
        %2039 = vmatprep.subr.bf16.mxu0 0
        %2040 = vmatpush1.bf16.msra.mxu0 %v2017
        %2041 = vmatprep.subr.bf16.mxu0 0
        %2042 = vmatpush1.bf16.msra.mxu0 %v2018
        %2043 = vmatprep.subr.bf16.mxu0 0
        %2044 = vmatpush1.bf16.msra.mxu0 0
        %2045 = vmatprep.subr.bf16.mxu0 0
        %2046 = vmatpush1.bf16.msra.mxu0 0
        %2047 = vmatprep.subr.bf16.mxu0 0
        %2048 = vmatpush1.bf16.msra.mxu0 0
        %2049 = vmatprep.subr.bf16.mxu0 0
        %2050 = vmatpush1.bf16.msra.mxu0 0
        %2051 = vmatprep.subr.bf16.mxu0 0
        %2052 = vmatpush1.bf16.msra.mxu0 0
        %2053 = vmatprep.subr.bf16.mxu0 0
        %2054 = vmatpush1.bf16.msra.mxu0 0
        %2055 = vmatprep.subr.bf16.mxu0 0
        %2056 = vmatpush1.bf16.msra.mxu0 0
        %2057 = vmatprep.subr.bf16.mxu0 0
        %2058 = vmatpush1.bf16.msra.mxu0 0
        %2059 = vmatprep.mubr.bf16.mxu0 0
        %2060 = vmatmul.mubr.bf16.gmra.mrb[0].mxu0 %v1952
        %v2061 = vpop.f32.mrb[0].mxu0
        %v2062 = vadd.f32 %v1977, %v2061
        %v2063 = vpop.f32.mrb[0].mxu0
        %v2064 = vpop.f32.mrb[0].mxu0
        %v2065 = vadd.f32 %v1977, %v2064
        %v2066 = vpop.f32.mrb[0].mxu0
        %2067 = vmatprep.mubr.bf16.mxu0 0
        %2068 = vmatmul.mubr.bf16.gmra.mrb[0].mxu0 %v1953
        %v2069 = vpop.f32.mrb[0].mxu0
        %v2070 = vadd.f32 %v1977, %v2069
        %v2071 = vpop.f32.mrb[0].mxu0
        %v2072 = vpop.f32.mrb[0].mxu0
        %v2073 = vadd.f32 %v1977, %v2072
        %v2074 = vpop.f32.mrb[0].mxu0
        %2075 = vdwg.mxu0
        %v2076 = vmax.f32 %v2062, 0.0
        %v2077 = vmax.f32 %v2065, 0.0
        %v2078 = vmax.f32 %v2070, 0.0
        %v2079 = vmax.f32 %v2073, 0.0
        %v2080 = vpack.c.bf16 %v2077, %v2076
        %v2081 = vpack.c.bf16 %v2079, %v2078
        %s2082 = scalar_lea.vmem %s7, 64
        %v2083 = vld [vmem:[%s2082] sm:$0xf]
        %v2084 = vld [vmem:[%s2082 + $0x4] sm:$0xf]
        %v2085 = vld [vmem:[%s2082 + $0x8] sm:$0xf]
        %v2086 = vld [vmem:[%s2082 + $0xc] sm:$0xf]
        %v2087 = vld [vmem:[%s2082 + $0x10] sm:$0xf]
        %v2088 = vld [vmem:[%s2082 + $0x14] sm:$0xf]
        %v2089 = vld [vmem:[%s2082 + $0x18] sm:$0xf]
        %v2090 = vld [vmem:[%s2082 + $0x1c] sm:$0xf]
        %v2099 = vunpack.c.l.b16 %v2083
        %v2100 = vunpack.c.l.b16 %v2084
        %v2101 = vunpack.c.l.b16 %v2085
        %v2102 = vunpack.c.l.b16 %v2086
        %v2103 = vunpack.c.l.b16 %v2087
        %v2104 = vunpack.c.l.b16 %v2088
        %v2105 = vunpack.c.l.b16 %v2089
        %v2106 = vunpack.c.l.b16 %v2090
        %v2107 = vpack.c.b16 %v2100, %v2099
        %v2108 = vpack.c.b16 %v2102, %v2101
        %v2109 = vpack.c.b16 %v2104, %v2103
        %v2110 = vpack.c.b16 %v2106, %v2105
        %v2116 = vsel %vm1446, %v2080, 0
        %v2119 = vsel %vm1446, %v2081, 0
        %2121 = vmatprep.subr.bf16.mxu0 0
        %2122 = vmatpush1.bf16.msra.mxu0 %v2107
        %2123 = vmatprep.subr.bf16.mxu0 0
        %2124 = vmatpush1.bf16.msra.mxu0 %v2108
        %2125 = vmatprep.subr.bf16.mxu0 0
        %2126 = vmatpush1.bf16.msra.mxu0 %v2109
        %2127 = vmatprep.subr.bf16.mxu0 0
        %2128 = vmatpush1.bf16.msra.mxu0 %v2110
        %2129 = vmatprep.subr.bf16.mxu0 0
        %2130 = vmatpush1.bf16.msra.mxu0 0
        %2131 = vmatprep.subr.bf16.mxu0 0
        %2132 = vmatpush1.bf16.msra.mxu0 0
        %2133 = vmatprep.subr.bf16.mxu0 0
        %2134 = vmatpush1.bf16.msra.mxu0 0
        %2135 = vmatprep.subr.bf16.mxu0 0
        %2136 = vmatpush1.bf16.msra.mxu0 0
        %2137 = vmatprep.subr.bf16.mxu0 0
        %2138 = vmatpush1.bf16.msra.mxu0 0
        %2139 = vmatprep.subr.bf16.mxu0 0
        %2140 = vmatpush1.bf16.msra.mxu0 0
        %2141 = vmatprep.subr.bf16.mxu0 0
        %2142 = vmatpush1.bf16.msra.mxu0 0
        %2143 = vmatprep.subr.bf16.mxu0 0
        %2144 = vmatpush1.bf16.msra.mxu0 0
        %2145 = vmatprep.subr.bf16.mxu0 0
        %2146 = vmatpush1.bf16.msra.mxu0 0
        %2147 = vmatprep.subr.bf16.mxu0 0
        %2148 = vmatpush1.bf16.msra.mxu0 0
        %2149 = vmatprep.subr.bf16.mxu0 0
        %2150 = vmatpush1.bf16.msra.mxu0 0
        %2151 = vmatprep.subr.bf16.mxu0 0
        %2152 = vmatpush1.bf16.msra.mxu0 0
        %2153 = vmatprep.mubr.bf16.mxu0 0
        %2154 = vmatmul.mubr.bf16.gmra.mrb[0].mxu0 %v2116
        %v2155 = vpop.f32.mrb[0].mxu0
        %v2156 = vadd.f32 0.0, %v2155
        %v2157 = vpop.f32.mrb[0].mxu0
        %v2158 = vpop.f32.mrb[0].mxu0
        %v2159 = vadd.f32 0.0, %v2158
        %v2160 = vpop.f32.mrb[0].mxu0
        %2161 = vmatprep.mubr.bf16.mxu0 0
        %2162 = vmatmul.mubr.bf16.gmra.mrb[0].mxu0 %v2119
        %v2163 = vpop.f32.mrb[0].mxu0
        %v2164 = vadd.f32 0.0, %v2163
        %v2165 = vpop.f32.mrb[0].mxu0
        %v2166 = vpop.f32.mrb[0].mxu0
        %v2167 = vadd.f32 0.0, %v2166
        %v2168 = vpop.f32.mrb[0].mxu0
        %2169 = vdwg.mxu0
        %v2170 = vadd.f32 %v1567, %v2156
        %v2171 = vadd.f32 %v1570, %v2159
        %v2172 = vadd.f32 %v1575, %v2164
        %v2173 = vadd.f32 %v1578, %v2167
        %v2174 = vld [vmem:[%s400 + $0x18] sm:$0xff]
        %v2175 = vld [vmem:[%s400 + $0x38] sm:$0xff]
        %v2176 = vld [vmem:[%s400 + $0x58] sm:$0xff]
        %v2177 = vld [vmem:[%s400 + $0x78] sm:$0xff]
        %v2178 = vpack.c.bf16 %v2175, %v2174
        %v2179 = vpack.c.bf16 %v2177, %v2176
        %s2180 = scalar_lea.vmem %s1, 384
        %v2181 = vld [vmem:[%s2180] sm:$0xff]
        %v2182 = vld [vmem:[%s2180 + $0x8] sm:$0xff]
        %v2183 = vld [vmem:[%s2180 + $0x10] sm:$0xff]
        %v2184 = vld [vmem:[%s2180 + $0x18] sm:$0xff]
        %v2185 = vld [vmem:[%s2180 + $0x20] sm:$0xff]
        %v2186 = vld [vmem:[%s2180 + $0x28] sm:$0xff]
        %v2187 = vld [vmem:[%s2180 + $0x30] sm:$0xff]
        %v2188 = vld [vmem:[%s2180 + $0x38] sm:$0xff]
        %v2189 = vld [vmem:[%s2180 + $0x40] sm:$0xff]
        %v2190 = vld [vmem:[%s2180 + $0x48] sm:$0xff]
        %v2191 = vld [vmem:[%s2180 + $0x50] sm:$0xff]
        %v2192 = vld [vmem:[%s2180 + $0x58] sm:$0xff]
        %v2193 = vld [vmem:[%s2180 + $0x60] sm:$0xff]
        %v2194 = vld [vmem:[%s2180 + $0x68] sm:$0xff]
        %v2195 = vld [vmem:[%s2180 + $0x70] sm:$0xff]
        %v2196 = vld [vmem:[%s2180 + $0x78] sm:$0xff]
        %s2197 = scalar_lea.vmem %s2, 6
        %v2198 = vld [vmem:[%s2197] sm:$0x3]
        %v2200 = vlaneseq
        %v2201 = vshrl.u32 %v2200, 7
        %v2202 = vsub.s32 0, %v2201
        %v2203 = vrot.slane %v2198, %v2202
        %v2204 = vlaneseq
        %v2205 = vshrl.u32 %v2204, 7
        %v2206 = vsub.s32 1, %v2205
        %v2207 = vrot.slane %v2198, %v2206
        %v2226 = vunpack.c.l.b16 %v2181
        %v2227 = vunpack.c.h.b16 %v2181
        %v2228 = vunpack.c.l.b16 %v2182
        %v2229 = vunpack.c.h.b16 %v2182
        %v2230 = vunpack.c.l.b16 %v2183
        %v2231 = vunpack.c.h.b16 %v2183
        %v2232 = vunpack.c.l.b16 %v2184
        %v2233 = vunpack.c.h.b16 %v2184
        %v2234 = vunpack.c.l.b16 %v2185
        %v2235 = vunpack.c.h.b16 %v2185
        %v2236 = vunpack.c.l.b16 %v2186
        %v2237 = vunpack.c.h.b16 %v2186
        %v2238 = vunpack.c.l.b16 %v2187
        %v2239 = vunpack.c.h.b16 %v2187
        %v2240 = vunpack.c.l.b16 %v2188
        %v2241 = vunpack.c.h.b16 %v2188
        %v2242 = vunpack.c.l.b16 %v2189
        %v2243 = vunpack.c.h.b16 %v2189
        %v2244 = vunpack.c.l.b16 %v2190
        %v2245 = vunpack.c.h.b16 %v2190
        %v2246 = vunpack.c.l.b16 %v2191
        %v2247 = vunpack.c.h.b16 %v2191
        %v2248 = vunpack.c.l.b16 %v2192
        %v2249 = vunpack.c.h.b16 %v2192
        %v2250 = vunpack.c.l.b16 %v2193
        %v2251 = vunpack.c.h.b16 %v2193
        %v2252 = vunpack.c.l.b16 %v2194
        %v2253 = vunpack.c.h.b16 %v2194
        %v2254 = vunpack.c.l.b16 %v2195
        %v2255 = vunpack.c.h.b16 %v2195
        %v2256 = vunpack.c.l.b16 %v2196
        %v2257 = vunpack.c.h.b16 %v2196
        %v2258 = vpack.c.b16 %v2228, %v2226
        %v2259 = vpack.c.b16 %v2229, %v2227
        %v2260 = vpack.c.b16 %v2232, %v2230
        %v2261 = vpack.c.b16 %v2233, %v2231
        %v2262 = vpack.c.b16 %v2236, %v2234
        %v2263 = vpack.c.b16 %v2237, %v2235
        %v2264 = vpack.c.b16 %v2240, %v2238
        %v2265 = vpack.c.b16 %v2241, %v2239
        %v2266 = vpack.c.b16 %v2244, %v2242
        %v2267 = vpack.c.b16 %v2245, %v2243
        %v2268 = vpack.c.b16 %v2248, %v2246
        %v2269 = vpack.c.b16 %v2249, %v2247
        %v2270 = vpack.c.b16 %v2252, %v2250
        %v2271 = vpack.c.b16 %v2253, %v2251
        %v2272 = vpack.c.b16 %v2256, %v2254
        %v2273 = vpack.c.b16 %v2257, %v2255
        %2290 = vmatprep.subr.bf16.mxu0 %v2259
        %2291 = vmatpush1.bf16.msra.mxu0 %v2258
        %2292 = vmatprep.subr.bf16.mxu0 %v2261
        %2293 = vmatpush1.bf16.msra.mxu0 %v2260
        %2294 = vmatprep.subr.bf16.mxu0 %v2263
        %2295 = vmatpush1.bf16.msra.mxu0 %v2262
        %2296 = vmatprep.subr.bf16.mxu0 %v2265
        %2297 = vmatpush1.bf16.msra.mxu0 %v2264
        %2298 = vmatprep.subr.bf16.mxu0 %v2267
        %2299 = vmatpush1.bf16.msra.mxu0 %v2266
        %2300 = vmatprep.subr.bf16.mxu0 %v2269
        %2301 = vmatpush1.bf16.msra.mxu0 %v2268
        %2302 = vmatprep.subr.bf16.mxu0 %v2271
        %2303 = vmatpush1.bf16.msra.mxu0 %v2270
        %2304 = vmatprep.subr.bf16.mxu0 %v2273
        %2305 = vmatpush1.bf16.msra.mxu0 %v2272
        %2306 = vmatprep.subr.bf16.mxu0 0
        %2307 = vmatpush1.bf16.msra.mxu0 0
        %2308 = vmatprep.subr.bf16.mxu0 0
        %2309 = vmatpush1.bf16.msra.mxu0 0
        %2310 = vmatprep.subr.bf16.mxu0 0
        %2311 = vmatpush1.bf16.msra.mxu0 0
        %2312 = vmatprep.subr.bf16.mxu0 0
        %2313 = vmatpush1.bf16.msra.mxu0 0
        %2314 = vmatprep.subr.bf16.mxu0 0
        %2315 = vmatpush1.bf16.msra.mxu0 0
        %2316 = vmatprep.subr.bf16.mxu0 0
        %2317 = vmatpush1.bf16.msra.mxu0 0
        %2318 = vmatprep.subr.bf16.mxu0 0
        %2319 = vmatpush1.bf16.msra.mxu0 0
        %2320 = vmatprep.subr.bf16.mxu0 0
        %2321 = vmatpush1.bf16.msra.mxu0 0
        %2322 = vmatprep.mubr.bf16.mxu0 0
        %2323 = vmatmul.mubr.bf16.gmra.mrb[0].mxu0 %v2178
        %v2324 = vpop.f32.mrb[0].mxu0
        %v2325 = vadd.f32 %v2203, %v2324
        %v2326 = vpop.f32.mrb[0].mxu0
        %v2327 = vadd.f32 %v2207, %v2326
        %v2328 = vpop.f32.mrb[0].mxu0
        %v2329 = vadd.f32 %v2203, %v2328
        %v2330 = vpop.f32.mrb[0].mxu0
        %v2331 = vadd.f32 %v2207, %v2330
        %2332 = vmatprep.mubr.bf16.mxu0 0
        %2333 = vmatmul.mubr.bf16.gmra.mrb[0].mxu0 %v2179
        %v2334 = vpop.f32.mrb[0].mxu0
        %v2335 = vadd.f32 %v2203, %v2334
        %v2336 = vpop.f32.mrb[0].mxu0
        %v2337 = vadd.f32 %v2207, %v2336
        %v2338 = vpop.f32.mrb[0].mxu0
        %v2339 = vadd.f32 %v2203, %v2338
        %v2340 = vpop.f32.mrb[0].mxu0
        %v2341 = vadd.f32 %v2207, %v2340
        %2342 = vdwg.mxu0
        %v2343 = vmax.f32 %v2325, 0.0
        %v2344 = vmax.f32 %v2327, 0.0
        %v2345 = vmax.f32 %v2329, 0.0
        %v2346 = vmax.f32 %v2331, 0.0
        %v2347 = vmax.f32 %v2335, 0.0
        %v2348 = vmax.f32 %v2337, 0.0
        %v2349 = vmax.f32 %v2339, 0.0
        %v2350 = vmax.f32 %v2341, 0.0
        %v2351 = vpack.c.bf16 %v2345, %v2343
        %v2352 = vpack.c.bf16 %v2346, %v2344
        %v2353 = vpack.c.bf16 %v2349, %v2347
        %v2354 = vpack.c.bf16 %v2350, %v2348
        %s2355 = scalar_lea.vmem [#allocation2], 384
        %v2356 = vld [vmem:[%s2355] sm:$0xf]
        %v2357 = vld [vmem:[%s2355 + $0x4] sm:$0xf]
        %v2358 = vld [vmem:[%s2355 + $0x8] sm:$0xf]
        %v2359 = vld [vmem:[%s2355 + $0xc] sm:$0xf]
        %v2360 = vld [vmem:[%s2355 + $0x10] sm:$0xf]
        %v2361 = vld [vmem:[%s2355 + $0x14] sm:$0xf]
        %v2362 = vld [vmem:[%s2355 + $0x18] sm:$0xf]
        %v2363 = vld [vmem:[%s2355 + $0x1c] sm:$0xf]
        %v2364 = vld [vmem:[%s2355 + $0x20] sm:$0xf]
        %v2365 = vld [vmem:[%s2355 + $0x24] sm:$0xf]
        %v2366 = vld [vmem:[%s2355 + $0x28] sm:$0xf]
        %v2367 = vld [vmem:[%s2355 + $0x2c] sm:$0xf]
        %v2368 = vld [vmem:[%s2355 + $0x30] sm:$0xf]
        %v2369 = vld [vmem:[%s2355 + $0x34] sm:$0xf]
        %v2370 = vld [vmem:[%s2355 + $0x38] sm:$0xf]
        %v2371 = vld [vmem:[%s2355 + $0x3c] sm:$0xf]
        %v2372 = vld [vmem:[%s2355 + $0x40] sm:$0xf]
        %v2373 = vld [vmem:[%s2355 + $0x44] sm:$0xf]
        %v2374 = vld [vmem:[%s2355 + $0x48] sm:$0xf]
        %v2375 = vld [vmem:[%s2355 + $0x4c] sm:$0xf]
        %v2376 = vld [vmem:[%s2355 + $0x50] sm:$0xf]
        %v2377 = vld [vmem:[%s2355 + $0x54] sm:$0xf]
        %v2378 = vld [vmem:[%s2355 + $0x58] sm:$0xf]
        %v2379 = vld [vmem:[%s2355 + $0x5c] sm:$0xf]
        %v2380 = vld [vmem:[%s2355 + $0x60] sm:$0xf]
        %v2381 = vld [vmem:[%s2355 + $0x64] sm:$0xf]
        %v2382 = vld [vmem:[%s2355 + $0x68] sm:$0xf]
        %v2383 = vld [vmem:[%s2355 + $0x6c] sm:$0xf]
        %v2384 = vld [vmem:[%s2355 + $0x70] sm:$0xf]
        %v2385 = vld [vmem:[%s2355 + $0x74] sm:$0xf]
        %v2386 = vld [vmem:[%s2355 + $0x78] sm:$0xf]
        %v2387 = vld [vmem:[%s2355 + $0x7c] sm:$0xf]
        %s2388 = scalar_lea.vmem %s4, 3
        %v2389 = vld [vmem:[%s2388] sm:$0x1]
        %v2391 = vlaneseq
        %v2392 = vshrl.u32 %v2391, 7
        %v2393 = vsub.s32 0, %v2392
        %v2394 = vrot.slane %v2389, %v2393
        %v2428 = vunpack.c.l.b16 %v2356
        %v2429 = vunpack.c.l.b16 %v2357
        %v2430 = vunpack.c.l.b16 %v2358
        %v2431 = vunpack.c.l.b16 %v2359
        %v2432 = vunpack.c.l.b16 %v2360
        %v2433 = vunpack.c.l.b16 %v2361
        %v2434 = vunpack.c.l.b16 %v2362
        %v2435 = vunpack.c.l.b16 %v2363
        %v2436 = vunpack.c.l.b16 %v2364
        %v2437 = vunpack.c.l.b16 %v2365
        %v2438 = vunpack.c.l.b16 %v2366
        %v2439 = vunpack.c.l.b16 %v2367
        %v2440 = vunpack.c.l.b16 %v2368
        %v2441 = vunpack.c.l.b16 %v2369
        %v2442 = vunpack.c.l.b16 %v2370
        %v2443 = vunpack.c.l.b16 %v2371
        %v2444 = vunpack.c.l.b16 %v2372
        %v2445 = vunpack.c.l.b16 %v2373
        %v2446 = vunpack.c.l.b16 %v2374
        %v2447 = vunpack.c.l.b16 %v2375
        %v2448 = vunpack.c.l.b16 %v2376
        %v2449 = vunpack.c.l.b16 %v2377
        %v2450 = vunpack.c.l.b16 %v2378
        %v2451 = vunpack.c.l.b16 %v2379
        %v2452 = vunpack.c.l.b16 %v2380
        %v2453 = vunpack.c.l.b16 %v2381
        %v2454 = vunpack.c.l.b16 %v2382
        %v2455 = vunpack.c.l.b16 %v2383
        %v2456 = vunpack.c.l.b16 %v2384
        %v2457 = vunpack.c.l.b16 %v2385
        %v2458 = vunpack.c.l.b16 %v2386
        %v2459 = vunpack.c.l.b16 %v2387
        %v2460 = vpack.c.b16 %v2429, %v2428
        %v2461 = vpack.c.b16 %v2431, %v2430
        %v2462 = vpack.c.b16 %v2433, %v2432
        %v2463 = vpack.c.b16 %v2435, %v2434
        %v2464 = vpack.c.b16 %v2437, %v2436
        %v2465 = vpack.c.b16 %v2439, %v2438
        %v2466 = vpack.c.b16 %v2441, %v2440
        %v2467 = vpack.c.b16 %v2443, %v2442
        %v2468 = vpack.c.b16 %v2445, %v2444
        %v2469 = vpack.c.b16 %v2447, %v2446
        %v2470 = vpack.c.b16 %v2449, %v2448
        %v2471 = vpack.c.b16 %v2451, %v2450
        %v2472 = vpack.c.b16 %v2453, %v2452
        %v2473 = vpack.c.b16 %v2455, %v2454
        %v2474 = vpack.c.b16 %v2457, %v2456
        %v2475 = vpack.c.b16 %v2459, %v2458
        %2492 = vmatprep.subr.bf16.mxu0 0
        %2493 = vmatpush1.bf16.msra.mxu0 %v2460
        %2494 = vmatprep.subr.bf16.mxu0 0
        %2495 = vmatpush1.bf16.msra.mxu0 %v2461
        %2496 = vmatprep.subr.bf16.mxu0 0
        %2497 = vmatpush1.bf16.msra.mxu0 %v2462
        %2498 = vmatprep.subr.bf16.mxu0 0
        %2499 = vmatpush1.bf16.msra.mxu0 %v2463
        %2500 = vmatprep.subr.bf16.mxu0 0
        %2501 = vmatpush1.bf16.msra.mxu0 %v2464
        %2502 = vmatprep.subr.bf16.mxu0 0
        %2503 = vmatpush1.bf16.msra.mxu0 %v2465
        %2504 = vmatprep.subr.bf16.mxu0 0
        %2505 = vmatpush1.bf16.msra.mxu0 %v2466
        %2506 = vmatprep.subr.bf16.mxu0 0
        %2507 = vmatpush1.bf16.msra.mxu0 %v2467
        %2508 = vmatprep.subr.bf16.mxu0 0
        %2509 = vmatpush1.bf16.msra.mxu0 %v2468
        %2510 = vmatprep.subr.bf16.mxu0 0
        %2511 = vmatpush1.bf16.msra.mxu0 %v2469
        %2512 = vmatprep.subr.bf16.mxu0 0
        %2513 = vmatpush1.bf16.msra.mxu0 %v2470
        %2514 = vmatprep.subr.bf16.mxu0 0
        %2515 = vmatpush1.bf16.msra.mxu0 %v2471
        %2516 = vmatprep.subr.bf16.mxu0 0
        %2517 = vmatpush1.bf16.msra.mxu0 %v2472
        %2518 = vmatprep.subr.bf16.mxu0 0
        %2519 = vmatpush1.bf16.msra.mxu0 %v2473
        %2520 = vmatprep.subr.bf16.mxu0 0
        %2521 = vmatpush1.bf16.msra.mxu0 %v2474
        %2522 = vmatprep.subr.bf16.mxu0 0
        %2523 = vmatpush1.bf16.msra.mxu0 %v2475
        %2524 = vmatprep.mubr.bf16.mxu0 %v2352
        %2525 = vmatmul.mubr.bf16.gmra.mrb[0].mxu0 %v2351
        %v2526 = vpop.f32.mrb[0].mxu0
        %v2527 = vadd.f32 %v2394, %v2526
        %v2528 = vpop.f32.mrb[0].mxu0
        %v2529 = vpop.f32.mrb[0].mxu0
        %v2530 = vadd.f32 %v2394, %v2529
        %v2531 = vpop.f32.mrb[0].mxu0
        %2532 = vmatprep.mubr.bf16.mxu0 %v2354
        %2533 = vmatmul.mubr.bf16.gmra.mrb[0].mxu0 %v2353
        %v2534 = vpop.f32.mrb[0].mxu0
        %v2535 = vadd.f32 %v2394, %v2534
        %v2536 = vpop.f32.mrb[0].mxu0
        %v2537 = vpop.f32.mrb[0].mxu0
        %v2538 = vadd.f32 %v2394, %v2537
        %v2539 = vpop.f32.mrb[0].mxu0
        %2540 = vdwg.mxu0
        %v2541 = vmax.f32 %v2527, 0.0
        %v2542 = vmax.f32 %v2530, 0.0
        %v2543 = vmax.f32 %v2535, 0.0
        %v2544 = vmax.f32 %v2538, 0.0
        %v2545 = vpack.c.bf16 %v2542, %v2541
        %v2546 = vpack.c.bf16 %v2544, %v2543
        %s2547 = scalar_lea.vmem %s5, 192
        %v2548 = vld [vmem:[%s2547] sm:$0xf]
        %v2549 = vld [vmem:[%s2547 + $0x4] sm:$0xf]
        %v2550 = vld [vmem:[%s2547 + $0x8] sm:$0xf]
        %v2551 = vld [vmem:[%s2547 + $0xc] sm:$0xf]
        %v2552 = vld [vmem:[%s2547 + $0x10] sm:$0xf]
        %v2553 = vld [vmem:[%s2547 + $0x14] sm:$0xf]
        %v2554 = vld [vmem:[%s2547 + $0x18] sm:$0xf]
        %v2555 = vld [vmem:[%s2547 + $0x1c] sm:$0xf]
        %v2556 = vld [vmem:[%s2547 + $0x20] sm:$0xf]
        %v2557 = vld [vmem:[%s2547 + $0x24] sm:$0xf]
        %v2558 = vld [vmem:[%s2547 + $0x28] sm:$0xf]
        %v2559 = vld [vmem:[%s2547 + $0x2c] sm:$0xf]
        %v2560 = vld [vmem:[%s2547 + $0x30] sm:$0xf]
        %v2561 = vld [vmem:[%s2547 + $0x34] sm:$0xf]
        %v2562 = vld [vmem:[%s2547 + $0x38] sm:$0xf]
        %v2563 = vld [vmem:[%s2547 + $0x3c] sm:$0xf]
        %s2564 = scalar_lea.vmem %s6, 3
        %v2565 = vld [vmem:[%s2564] sm:$0x1]
        %v2567 = vlaneseq
        %v2568 = vshrl.u32 %v2567, 7
        %v2569 = vsub.s32 0, %v2568
        %v2570 = vrot.slane %v2565, %v2569
        %v2588 = vunpack.c.l.b16 %v2548
        %v2589 = vunpack.c.l.b16 %v2549
        %v2590 = vunpack.c.l.b16 %v2550
        %v2591 = vunpack.c.l.b16 %v2551
        %v2592 = vunpack.c.l.b16 %v2552
        %v2593 = vunpack.c.l.b16 %v2553
        %v2594 = vunpack.c.l.b16 %v2554
        %v2595 = vunpack.c.l.b16 %v2555
        %v2596 = vunpack.c.l.b16 %v2556
        %v2597 = vunpack.c.l.b16 %v2557
        %v2598 = vunpack.c.l.b16 %v2558
        %v2599 = vunpack.c.l.b16 %v2559
        %v2600 = vunpack.c.l.b16 %v2560
        %v2601 = vunpack.c.l.b16 %v2561
        %v2602 = vunpack.c.l.b16 %v2562
        %v2603 = vunpack.c.l.b16 %v2563
        %v2604 = vpack.c.b16 %v2589, %v2588
        %v2605 = vpack.c.b16 %v2591, %v2590
        %v2606 = vpack.c.b16 %v2593, %v2592
        %v2607 = vpack.c.b16 %v2595, %v2594
        %v2608 = vpack.c.b16 %v2597, %v2596
        %v2609 = vpack.c.b16 %v2599, %v2598
        %v2610 = vpack.c.b16 %v2601, %v2600
        %v2611 = vpack.c.b16 %v2603, %v2602
        %2620 = vmatprep.subr.bf16.mxu0 0
        %2621 = vmatpush1.bf16.msra.mxu0 %v2604
        %2622 = vmatprep.subr.bf16.mxu0 0
        %2623 = vmatpush1.bf16.msra.mxu0 %v2605
        %2624 = vmatprep.subr.bf16.mxu0 0
        %2625 = vmatpush1.bf16.msra.mxu0 %v2606
        %2626 = vmatprep.subr.bf16.mxu0 0
        %2627 = vmatpush1.bf16.msra.mxu0 %v2607
        %2628 = vmatprep.subr.bf16.mxu0 0
        %2629 = vmatpush1.bf16.msra.mxu0 %v2608
        %2630 = vmatprep.subr.bf16.mxu0 0
        %2631 = vmatpush1.bf16.msra.mxu0 %v2609
        %2632 = vmatprep.subr.bf16.mxu0 0
        %2633 = vmatpush1.bf16.msra.mxu0 %v2610
        %2634 = vmatprep.subr.bf16.mxu0 0
        %2635 = vmatpush1.bf16.msra.mxu0 %v2611
        %2636 = vmatprep.subr.bf16.mxu0 0
        %2637 = vmatpush1.bf16.msra.mxu0 0
        %2638 = vmatprep.subr.bf16.mxu0 0
        %2639 = vmatpush1.bf16.msra.mxu0 0
        %2640 = vmatprep.subr.bf16.mxu0 0
        %2641 = vmatpush1.bf16.msra.mxu0 0
        %2642 = vmatprep.subr.bf16.mxu0 0
        %2643 = vmatpush1.bf16.msra.mxu0 0
        %2644 = vmatprep.subr.bf16.mxu0 0
        %2645 = vmatpush1.bf16.msra.mxu0 0
        %2646 = vmatprep.subr.bf16.mxu0 0
        %2647 = vmatpush1.bf16.msra.mxu0 0
        %2648 = vmatprep.subr.bf16.mxu0 0
        %2649 = vmatpush1.bf16.msra.mxu0 0
        %2650 = vmatprep.subr.bf16.mxu0 0
        %2651 = vmatpush1.bf16.msra.mxu0 0
        %2652 = vmatprep.mubr.bf16.mxu0 0
        %2653 = vmatmul.mubr.bf16.gmra.mrb[0].mxu0 %v2545
        %v2654 = vpop.f32.mrb[0].mxu0
        %v2655 = vadd.f32 %v2570, %v2654
        %v2656 = vpop.f32.mrb[0].mxu0
        %v2657 = vpop.f32.mrb[0].mxu0
        %v2658 = vadd.f32 %v2570, %v2657
        %v2659 = vpop.f32.mrb[0].mxu0
        %2660 = vmatprep.mubr.bf16.mxu0 0
        %2661 = vmatmul.mubr.bf16.gmra.mrb[0].mxu0 %v2546
        %v2662 = vpop.f32.mrb[0].mxu0
        %v2663 = vadd.f32 %v2570, %v2662
        %v2664 = vpop.f32.mrb[0].mxu0
        %v2665 = vpop.f32.mrb[0].mxu0
        %v2666 = vadd.f32 %v2570, %v2665
        %v2667 = vpop.f32.mrb[0].mxu0
        %2668 = vdwg.mxu0
        %v2669 = vmax.f32 %v2655, 0.0
        %v2670 = vmax.f32 %v2658, 0.0
        %v2671 = vmax.f32 %v2663, 0.0
        %v2672 = vmax.f32 %v2666, 0.0
        %v2673 = vpack.c.bf16 %v2670, %v2669
        %v2674 = vpack.c.bf16 %v2672, %v2671
        %s2675 = scalar_lea.vmem %s7, 96
        %v2676 = vld [vmem:[%s2675] sm:$0xf]
        %v2677 = vld [vmem:[%s2675 + $0x4] sm:$0xf]
        %v2678 = vld [vmem:[%s2675 + $0x8] sm:$0xf]
        %v2679 = vld [vmem:[%s2675 + $0xc] sm:$0xf]
        %v2680 = vld [vmem:[%s2675 + $0x10] sm:$0xf]
        %v2681 = vld [vmem:[%s2675 + $0x14] sm:$0xf]
        %v2682 = vld [vmem:[%s2675 + $0x18] sm:$0xf]
        %v2683 = vld [vmem:[%s2675 + $0x1c] sm:$0xf]
        %v2692 = vunpack.c.l.b16 %v2676
        %v2693 = vunpack.c.l.b16 %v2677
        %v2694 = vunpack.c.l.b16 %v2678
        %v2695 = vunpack.c.l.b16 %v2679
        %v2696 = vunpack.c.l.b16 %v2680
        %v2697 = vunpack.c.l.b16 %v2681
        %v2698 = vunpack.c.l.b16 %v2682
        %v2699 = vunpack.c.l.b16 %v2683
        %v2700 = vpack.c.b16 %v2693, %v2692
        %v2701 = vpack.c.b16 %v2695, %v2694
        %v2702 = vpack.c.b16 %v2697, %v2696
        %v2703 = vpack.c.b16 %v2699, %v2698
        %v2709 = vsel %vm1446, %v2673, 0
        %v2712 = vsel %vm1446, %v2674, 0
        %2714 = vmatprep.subr.bf16.mxu0 0
        %2715 = vmatpush1.bf16.msra.mxu0 %v2700
        %2716 = vmatprep.subr.bf16.mxu0 0
        %2717 = vmatpush1.bf16.msra.mxu0 %v2701
        %2718 = vmatprep.subr.bf16.mxu0 0
        %2719 = vmatpush1.bf16.msra.mxu0 %v2702
        %2720 = vmatprep.subr.bf16.mxu0 0
        %2721 = vmatpush1.bf16.msra.mxu0 %v2703
        %2722 = vmatprep.subr.bf16.mxu0 0
        %2723 = vmatpush1.bf16.msra.mxu0 0
        %2724 = vmatprep.subr.bf16.mxu0 0
        %2725 = vmatpush1.bf16.msra.mxu0 0
        %2726 = vmatprep.subr.bf16.mxu0 0
        %2727 = vmatpush1.bf16.msra.mxu0 0
        %2728 = vmatprep.subr.bf16.mxu0 0
        %2729 = vmatpush1.bf16.msra.mxu0 0
        %2730 = vmatprep.subr.bf16.mxu0 0
        %2731 = vmatpush1.bf16.msra.mxu0 0
        %2732 = vmatprep.subr.bf16.mxu0 0
        %2733 = vmatpush1.bf16.msra.mxu0 0
        %2734 = vmatprep.subr.bf16.mxu0 0
        %2735 = vmatpush1.bf16.msra.mxu0 0
        %2736 = vmatprep.subr.bf16.mxu0 0
        %2737 = vmatpush1.bf16.msra.mxu0 0
        %2738 = vmatprep.subr.bf16.mxu0 0
        %2739 = vmatpush1.bf16.msra.mxu0 0
        %2740 = vmatprep.subr.bf16.mxu0 0
        %2741 = vmatpush1.bf16.msra.mxu0 0
        %2742 = vmatprep.subr.bf16.mxu0 0
        %2743 = vmatpush1.bf16.msra.mxu0 0
        %2744 = vmatprep.subr.bf16.mxu0 0
        %2745 = vmatpush1.bf16.msra.mxu0 0
        %2746 = vmatprep.mubr.bf16.mxu0 0
        %2747 = vmatmul.mubr.bf16.gmra.mrb[0].mxu0 %v2709
        %v2748 = vpop.f32.mrb[0].mxu0
        %v2749 = vadd.f32 0.0, %v2748
        %v2750 = vpop.f32.mrb[0].mxu0
        %v2751 = vpop.f32.mrb[0].mxu0
        %v2752 = vadd.f32 0.0, %v2751
        %v2753 = vpop.f32.mrb[0].mxu0
        %2754 = vmatprep.mubr.bf16.mxu0 0
        %2755 = vmatmul.mubr.bf16.gmra.mrb[0].mxu0 %v2712
        %v2756 = vpop.f32.mrb[0].mxu0
        %v2757 = vadd.f32 0.0, %v2756
        %v2758 = vpop.f32.mrb[0].mxu0
        %v2759 = vpop.f32.mrb[0].mxu0
        %v2760 = vadd.f32 0.0, %v2759
        %v2761 = vpop.f32.mrb[0].mxu0
        %2762 = vdwg.mxu0
        %v2763 = vadd.f32 %v2170, %v2749
        %v2764 = vadd.f32 %v2171, %v2752
        %v2765 = vadd.f32 %v2172, %v2757
        %v2766 = vadd.f32 %v2173, %v2760
        %v2767 = vld [vmem:[%s8] sm:$0x1]
        %v2769 = vlaneseq
        %v2770 = vshrl.u32 %v2769, 7
        %v2771 = vsub.s32 0, %v2770
        %v2772 = vrot.slane %v2767, %v2771
        %v2774 = vadd.f32 %v2763, %v2772
        %v2775 = vadd.f32 %v2764, %v2772
        %v2776 = vadd.f32 %v2765, %v2772
        %v2777 = vadd.f32 %v2766, %v2772
        %v2778 = vmax.f32 %v2774, 0.0
        %v2779 = vmax.f32 %v2775, 0.0
        %v2780 = vmax.f32 %v2776, 0.0
        %v2781 = vmax.f32 %v2777, 0.0
        %v2782 = vpack.c.bf16 %v2779, %v2778
        %v2783 = vpack.c.bf16 %v2781, %v2780
        %v2784 = vld [vmem:[%s9] sm:$0xf]
        %v2785 = vld [vmem:[%s9 + $0x4] sm:$0xf]
        %v2786 = vld [vmem:[%s9 + $0x8] sm:$0xf]
        %v2787 = vld [vmem:[%s9 + $0xc] sm:$0xf]
        %v2788 = vld [vmem:[%s9 + $0x10] sm:$0xf]
        %v2789 = vld [vmem:[%s9 + $0x14] sm:$0xf]
        %v2790 = vld [vmem:[%s9 + $0x18] sm:$0xf]
        %v2791 = vld [vmem:[%s9 + $0x1c] sm:$0xf]
        %v2792 = vld [vmem:[%s9 + $0x20] sm:$0xf]
        %v2793 = vld [vmem:[%s9 + $0x24] sm:$0xf]
        %v2794 = vld [vmem:[%s9 + $0x28] sm:$0xf]
        %v2795 = vld [vmem:[%s9 + $0x2c] sm:$0xf]
        %v2796 = vld [vmem:[%s9 + $0x30] sm:$0xf]
        %v2797 = vld [vmem:[%s9 + $0x34] sm:$0xf]
        %v2798 = vld [vmem:[%s9 + $0x38] sm:$0xf]
        %v2799 = vld [vmem:[%s9 + $0x3c] sm:$0xf]
        %v2800 = vld [vmem:[%s10] sm:$0x1]
        %v2802 = vlaneseq
        %v2803 = vshrl.u32 %v2802, 7
        %v2804 = vsub.s32 0, %v2803
        %v2805 = vrot.slane %v2800, %v2804
        %v2823 = vunpack.c.l.b16 %v2784
        %v2824 = vunpack.c.l.b16 %v2785
        %v2825 = vunpack.c.l.b16 %v2786
        %v2826 = vunpack.c.l.b16 %v2787
        %v2827 = vunpack.c.l.b16 %v2788
        %v2828 = vunpack.c.l.b16 %v2789
        %v2829 = vunpack.c.l.b16 %v2790
        %v2830 = vunpack.c.l.b16 %v2791
        %v2831 = vunpack.c.l.b16 %v2792
        %v2832 = vunpack.c.l.b16 %v2793
        %v2833 = vunpack.c.l.b16 %v2794
        %v2834 = vunpack.c.l.b16 %v2795
        %v2835 = vunpack.c.l.b16 %v2796
        %v2836 = vunpack.c.l.b16 %v2797
        %v2837 = vunpack.c.l.b16 %v2798
        %v2838 = vunpack.c.l.b16 %v2799
        %v2839 = vpack.c.b16 %v2824, %v2823
        %v2840 = vpack.c.b16 %v2826, %v2825
        %v2841 = vpack.c.b16 %v2828, %v2827
        %v2842 = vpack.c.b16 %v2830, %v2829
        %v2843 = vpack.c.b16 %v2832, %v2831
        %v2844 = vpack.c.b16 %v2834, %v2833
        %v2845 = vpack.c.b16 %v2836, %v2835
        %v2846 = vpack.c.b16 %v2838, %v2837
        %2855 = vmatprep.subr.bf16.mxu0 0
        %2856 = vmatpush1.bf16.msra.mxu0 %v2839
        %2857 = vmatprep.subr.bf16.mxu0 0
        %2858 = vmatpush1.bf16.msra.mxu0 %v2840
        %2859 = vmatprep.subr.bf16.mxu0 0
        %2860 = vmatpush1.bf16.msra.mxu0 %v2841
        %2861 = vmatprep.subr.bf16.mxu0 0
        %2862 = vmatpush1.bf16.msra.mxu0 %v2842
        %2863 = vmatprep.subr.bf16.mxu0 0
        %2864 = vmatpush1.bf16.msra.mxu0 %v2843
        %2865 = vmatprep.subr.bf16.mxu0 0
        %2866 = vmatpush1.bf16.msra.mxu0 %v2844
        %2867 = vmatprep.subr.bf16.mxu0 0
        %2868 = vmatpush1.bf16.msra.mxu0 %v2845
        %2869 = vmatprep.subr.bf16.mxu0 0
        %2870 = vmatpush1.bf16.msra.mxu0 %v2846
        %2871 = vmatprep.subr.bf16.mxu0 0
        %2872 = vmatpush1.bf16.msra.mxu0 0
        %2873 = vmatprep.subr.bf16.mxu0 0
        %2874 = vmatpush1.bf16.msra.mxu0 0
        %2875 = vmatprep.subr.bf16.mxu0 0
        %2876 = vmatpush1.bf16.msra.mxu0 0
        %2877 = vmatprep.subr.bf16.mxu0 0
        %2878 = vmatpush1.bf16.msra.mxu0 0
        %2879 = vmatprep.subr.bf16.mxu0 0
        %2880 = vmatpush1.bf16.msra.mxu0 0
        %2881 = vmatprep.subr.bf16.mxu0 0
        %2882 = vmatpush1.bf16.msra.mxu0 0
        %2883 = vmatprep.subr.bf16.mxu0 0
        %2884 = vmatpush1.bf16.msra.mxu0 0
        %2885 = vmatprep.subr.bf16.mxu0 0
        %2886 = vmatpush1.bf16.msra.mxu0 0
        %2887 = vmatprep.mubr.bf16.mxu0 0
        %2888 = vmatmul.mubr.bf16.gmra.mrb[0].mxu0 %v2782
        %v2889 = vpop.f32.mrb[0].mxu0
        %v2890 = vadd.f32 %v2805, %v2889
        %v2891 = vpop.f32.mrb[0].mxu0
        %v2892 = vpop.f32.mrb[0].mxu0
        %v2893 = vadd.f32 %v2805, %v2892
        %v2894 = vpop.f32.mrb[0].mxu0
        %2895 = vmatprep.mubr.bf16.mxu0 0
        %2896 = vmatmul.mubr.bf16.gmra.mrb[0].mxu0 %v2783
        %v2897 = vpop.f32.mrb[0].mxu0
        %v2898 = vadd.f32 %v2805, %v2897
        %v2899 = vpop.f32.mrb[0].mxu0
        %v2900 = vpop.f32.mrb[0].mxu0
        %v2901 = vadd.f32 %v2805, %v2900
        %v2902 = vpop.f32.mrb[0].mxu0
        %2903 = vdwg.mxu0
        %2904 = vst [vmem:[%s406] sm:$0xff] %v2890
        %2905 = vst [vmem:[%s406 + $0x8] sm:$0xff] %v2893
        %2906 = vst [vmem:[%s406 + $0x10] sm:$0xff] %v2898
        %2907 = vst [vmem:[%s406 + $0x18] sm:$0xff] %v2901
        %s2908 = smul.u32 4, %s23
        %p2909 = scmp.lt.s32.totalorder %s2908, 7
        %s2910 = scalar_select %p2909, %s2908, 7
        %s2911 = smul.addr %s2910, 8
        %s2912 = scalar_lea.vmem %s11, %s2911
        // Predicated region
        $region69: #{multinet_forward.1} parent=63 // pred_check
          %p2913 = pneg %p277
        $region70: #{multinet_forward.1} parent=63 // pred_check_branch
          %2915 = sbr.rel (%p2913) target = $region72
        $region71: #{multinet_forward.1} parent=63 // pred_region
          %s2916 = smul.u32 4, %s23
        $region72: #{multinet_forward.1} parent=63 // pred_fallthru
          _
      $region64: #{multinet_forward.1} parent=5 // pred_fallthru
        _
      %p2917 = scmp.le.s32.totalorder 2, %s18
      // Predicated region
      $region73: #{multinet_forward.1} parent=5 // pred_check
        %p2918 = pneg %p2917
      $region74: #{multinet_forward.1} parent=5 // pred_check_branch
        %2920 = sbr.rel (%p2918) target = $region76
      $region75: #{multinet_forward.1} parent=5 // pred_region
        %s2921 = ssub.s32 %s18, 2
        // Predicated region
        $region77: #{multinet_forward.1} parent=75 // pred_check
          %p2922 = pneg %p283
        $region78: #{multinet_forward.1} parent=75 // pred_check_branch
          %2924 = sbr.rel (%p2922) target = $region80
        $region79: #{multinet_forward.1} parent=75 // pred_region
          %s2925 = smul.u32 4, %s24
          %p2926 = scmp.lt.s32.totalorder %s2925, 7
          %s2927 = scalar_select %p2926, %s2925, 7
          %s2928 = smul.addr %s2927, 8
          %s2929 = scalar_lea.vmem %s11, %s2928
        $region80: #{multinet_forward.1} parent=75 // pred_fallthru
          _
      $region76: #{multinet_forward.1} parent=5 // pred_fallthru
        _
    $region6: #{multinet_forward.1} parent=1 // loop_footer
      %s22 = sadd.s32 1, %s18
    $region7: #{multinet_forward.1} parent=1 // loop_footer_branch
      %17 = sbr.rel target = $region3
    $region8: #{multinet_forward.1} parent=1 // loop_exit
      _
    %2930 = vsyncpa [#allocation3], 1
    %s2931 = scalar_lea.sflag [#allocation3], 1
    %2932 = vsyncpa %s2931, 1

</llo_original>
